<compile_context>
chip_gen: v5e
topology: v5e:2x2
jax: 0.10.0
libtpu: 0.0.40
codegen_flags: <defaults>
</compile_context>

<pallas_src>
import functools

import jax
import jax.numpy as jnp
from jax.experimental import pallas as pl
from jax.experimental.pallas import tpu as pltpu


def _round_up(x: int, m: int) -> int:
    return ((x + m - 1) // m) * m


def _cdiv(a: int, b: int) -> int:
    return -(-a // b)


def _bspec(shape, index_map, buffers=None):
    """BlockSpec with an optional buffer-count hint (falls back if unsupported)."""
    if buffers is None:
        return pl.BlockSpec(shape, index_map)
    try:
        return pl.BlockSpec(shape, index_map, pipeline_mode=pl.Buffered(buffers))
    except TypeError:  # older BlockSpec signature without pipeline_mode
        return pl.BlockSpec(shape, index_map)


def _physical_vmem_bytes(default=64 * 1024 * 1024) -> int:
    try:
        return int(pltpu.get_tpu_info().vmem_capacity_bytes)
    except Exception:
        return default


def _pwff_kernel(x_ref, gamma_ref, beta_ref, w1_ref, b1_ref, w2_ref, b2_ref,
                 o_ref, xn_ref, acc_ref, *, eps: float, d_true: int, mxu_dtype):
    k = pl.program_id(1)

    @pl.when(k == 0)
    def _():
        # LayerNorm (f32) over the *true* feature width; done once per row tile.
        x = x_ref[...].astype(jnp.float32)
        d_pad = x.shape[-1]
        inv_d = 1.0 / float(d_true)
        mean = jnp.sum(x, axis=-1, keepdims=True) * inv_d
        centered = x - mean
        if d_pad != d_true:
            col = jax.lax.broadcasted_iota(jnp.int32, (1, d_pad), 1)
            centered_stats = jnp.where(col < d_true, centered, 0.0)
        else:
            centered_stats = centered
        var = jnp.sum(centered_stats * centered_stats, axis=-1, keepdims=True) * inv_d
        x_norm = centered * jax.lax.rsqrt(var + eps)
        # gamma/beta are zero-padded -> padded feature columns become exactly 0.
        x_norm = x_norm * gamma_ref[...] + beta_ref[...]
        xn_ref[...] = x_norm.astype(mxu_dtype)
        acc_ref[...] = jnp.zeros_like(acc_ref)

    # Linear(d -> ff_tile) + bias + ReLU on this ff chunk (Dropout = identity).
    h = jnp.dot(xn_ref[...], w1_ref[...], preferred_element_type=jnp.float32)
    h = jnp.maximum(h + b1_ref[...], 0.0)
    # Partial Linear(ff_tile -> d), accumulated in f32 across the ff grid axis.
    acc_ref[...] += jnp.dot(h.astype(mxu_dtype), w2_ref[...],
                            preferred_element_type=jnp.float32)

    @pl.when(k == pl.num_programs(1) - 1)
    def _():
        # Output bias + pre-norm residual, added exactly once on the last step.
        o_ref[...] = (acc_ref[...] + b2_ref[...]
                      + x_ref[...].astype(jnp.float32)).astype(o_ref.dtype)


def prepare_pwff_params(gamma, beta, w1, b1, w2, b2, *, eps=1e-6,
                        mxu_dtype=jnp.bfloat16, ff_tile_target=2048,
                        weight_resident_budget=None):
    """One-time (off the hot path) padding / bf16 cast of the FFN parameters."""
    d, ff = w1.shape
    assert w2.shape == (ff, d) and gamma.shape == (d,) and b1.shape == (ff,)
    d_pad = _round_up(d, 128)
    ff_pad = _round_up(ff, 128)

    w_item = jnp.dtype(mxu_dtype).itemsize
    if weight_resident_budget is None:
        # Keep both weight matrices fully VMEM-resident only if they leave room
        # for activations/accumulators: ~half of physical VMEM minus headroom
        # (v7x: 64 MiB -> ~16 MiB budget; v5e/v6e: 128 MiB -> ~48 MiB budget).
        phys = _physical_vmem_bytes()
        weight_resident_budget = max(phys // 2 - (16 << 20), 16 << 20)

    if 2 * d_pad * ff_pad * w_item <= weight_resident_budget:
        ff_tile = ff_pad                        # single ff step, weights resident
    else:
        ff_tile = min(_round_up(ff_tile_target, 128), ff_pad)
        ff_pad = _round_up(ff_pad, ff_tile)     # zero-padded ff slices are inert

    gamma_p = jnp.pad(gamma.astype(jnp.float32), (0, d_pad - d)).reshape(1, d_pad)
    beta_p = jnp.pad(beta.astype(jnp.float32), (0, d_pad - d)).reshape(1, d_pad)
    b1_p = jnp.pad(b1.astype(jnp.float32), (0, ff_pad - ff)).reshape(1, ff_pad)
    b2_p = jnp.pad(b2.astype(jnp.float32), (0, d_pad - d)).reshape(1, d_pad)
    w1_p = jnp.pad(w1, ((0, d_pad - d), (0, ff_pad - ff))).astype(mxu_dtype)
    w2_p = jnp.pad(w2, ((0, ff_pad - ff), (0, d_pad - d))).astype(mxu_dtype)

    return dict(gamma=gamma_p, beta=beta_p, w1=w1_p, b1=b1_p, w2=w2_p, b2=b2_p,
                meta=dict(d=d, ff=ff, d_pad=d_pad, ff_pad=ff_pad, ff_tile=ff_tile,
                          eps=eps, mxu_dtype=mxu_dtype))


def positionwise_feed_forward(x, params, *, row_tile=256, single_buffer_consts=True):
    """
    x: (batch, seq, input_size) -> (batch, seq, input_size)
    params: output of prepare_pwff_params (pre-padded, bf16 weights).
    """
    meta = params["meta"]
    d, d_pad, ff_pad, ff_tile = meta["d"], meta["d_pad"], meta["ff_pad"], meta["ff_tile"]
    mxu_dtype, eps = meta["mxu_dtype"], meta["eps"]

    batch, seq, d_in = x.shape
    assert d_in == d
    rows = batch * seq

    # Row tile: as large as practical, but keep >=2 "parallel" steps so both
    # v7x TensorCores get work (no-op on single-TC v5e/v6e).
    rt = min(row_tile, _round_up(rows, 8))
    if rows > 8 and _cdiv(rows, rt) < 2:
        rt = _round_up(_cdiv(rows, 2), 8)
    n_row = _cdiv(rows, rt)
    n_ff = ff_pad // ff_tile

    x2d = x.reshape(rows, d)
    if d_pad != d:
        x2d = jnp.pad(x2d, ((0, 0), (0, d_pad - d)))   # feature-lane padding only

    kernel = functools.partial(_pwff_kernel, eps=eps, d_true=d, mxu_dtype=mxu_dtype)

    # Constant-index blocks only need a single VMEM buffer (DMA'd once).
    const_buf = 1 if single_buffer_consts else None
    w_buf = const_buf if n_ff == 1 else None    # weights pipeline when ff-tiled

    in_specs = [
        _bspec((rt, d_pad), lambda i, k: (i, 0)),               # x rows
        _bspec((1, d_pad), lambda i, k: (0, 0), const_buf),     # gamma
        _bspec((1, d_pad), lambda i, k: (0, 0), const_buf),     # beta
        _bspec((d_pad, ff_tile), lambda i, k: (0, k), w_buf),   # w1 tile (bf16)
        _bspec((1, ff_tile), lambda i, k: (0, k), w_buf),       # b1 tile
        _bspec((ff_tile, d_pad), lambda i, k: (k, 0), w_buf),   # w2 tile (bf16)
        _bspec((1, d_pad), lambda i, k: (0, 0), const_buf),     # b2
    ]
    out_specs = pl.BlockSpec((rt, d_pad), lambda i, k: (i, 0))

    # VMEM requirement of this tiling (+ headroom), capped by physical VMEM.
    x_item = jnp.dtype(x.dtype).itemsize
    w_item = jnp.dtype(mxu_dtype).itemsize
    w_nbuf = 1 if (single_buffer_consts and n_ff == 1) else 2
    needed = (4 * rt * d_pad * x_item                      # x + out, double-buffered
              + w_nbuf * 2 * d_pad * ff_tile * w_item      # w1 + w2 tiles
              + w_nbuf * ff_tile * 4 + 3 * d_pad * 4       # biases / norm params
              + rt * d_pad * (w_item + 4)                  # x_norm + acc scratch
              + rt * ff_tile * 4)                          # live ReLU intermediate
    phys = _physical_vmem_bytes()
    vmem_limit = int(min(int(phys * 0.85),
                         max(32 * 1024 * 1024, int(needed * 1.5) + (4 << 20))))

    cost = pl.CostEstimate(
        flops=4 * rows * d_pad * ff_pad,                   # two matmuls
        transcendentals=rows,                              # rsqrt per row
        bytes_accessed=(2 * rows * d_pad * x_item          # x in + out
                        + 2 * d_pad * ff_pad * w_item      # bf16 weights
                        + (3 * d_pad + ff_pad) * 4))       # norm params + biases

    out = pl.pallas_call(
        kernel,
        out_shape=jax.ShapeDtypeStruct((rows, d_pad), x.dtype),
        grid_spec=pltpu.PrefetchScalarGridSpec(
            num_scalar_prefetch=0,
            grid=(n_row, n_ff),                            # ff (reduction) axis last
            in_specs=in_specs,
            out_specs=out_specs,
            scratch_shapes=[pltpu.VMEM((rt, d_pad), mxu_dtype),     # x_norm
                            pltpu.VMEM((rt, d_pad), jnp.float32)],  # accumulator
        ),
        compiler_params=pltpu.CompilerParams(
            dimension_semantics=("parallel", "arbitrary"),
            vmem_limit_bytes=vmem_limit),
        cost_estimate=cost,
        # TODO(synk): if profiling shows the x/out DMA exposed in memory-bound
        # configs, bump their pipeline_mode to pl.Buffered(3).
    )(x2d, params["gamma"], params["beta"], params["w1"], params["b1"],
      params["w2"], params["b2"])

    if d_pad != d:
        out = out[:, :d]
    return out.reshape(batch, seq, d)


def _reference(x, gamma, beta, w1, b1, w2, b2, eps=1e-6):
    xf = x.astype(jnp.float32)
    mean = jnp.mean(xf, axis=-1, keepdims=True)
    var = jnp.mean((xf - mean) ** 2, axis=-1, keepdims=True)
    xn = (xf - mean) / jnp.sqrt(var + eps) * gamma + beta
    h = jnp.maximum(xn @ w1 + b1, 0.0)
    y = h @ w2 + b2
    return (y + xf).astype(x.dtype)


if __name__ == "__main__":
    # Small shapes consistent with the module: batch=2, seq=8,
    # input_size=32, ff_size=64.
    batch, seq, input_size, ff_size = 2, 8, 32, 64

    key = jax.random.PRNGKey(0)
    k_x, k_w1, k_b1, k_w2, k_b2 = jax.random.split(key, 5)

    x = jax.random.normal(k_x, (batch, seq, input_size), dtype=jnp.float32)

    # Deterministic parameter init (synthetic, not a checkpoint).
    gamma = jnp.ones((input_size,), jnp.float32)
    beta = jnp.zeros((input_size,), jnp.float32)
    w1 = jax.random.normal(k_w1, (input_size, ff_size), jnp.float32) * 0.05
    b1 = jax.random.normal(k_b1, (ff_size,), jnp.float32) * 0.01
    w2 = jax.random.normal(k_w2, (ff_size, input_size), jnp.float32) * 0.05
    b2 = jax.random.normal(k_b2, (input_size,), jnp.float32) * 0.01

    # One-time parameter prep (pad + bf16 cast) — off the per-call hot path.
    params = prepare_pwff_params(gamma, beta, w1, b1, w2, b2, eps=1e-6)

    # TODO(synk): dropout is identity here (inference mode); training-mode
    # dropout would need pltpu.prng_seed/prng_random_bits masking.
    try:
        out = positionwise_feed_forward(x, params)
    except Exception:
        # Safety net if this JAX build rejects pl.Buffered(1) single-buffering.
        out = positionwise_feed_forward(x, params, single_buffer_consts=False)
    out = jax.block_until_ready(out)

    ref = _reference(x, gamma, beta, w1, b1, w2, b2)
    assert out.shape == (batch, seq, input_size)
    # bf16 MXU operands (f32 accumulation) => slightly looser tolerance vs the
    # pure-f32 reference.
    assert jnp.allclose(out, ref, atol=2e-2, rtol=2e-2), "mismatch vs reference"

    print("KERNEL_OK")
</pallas_src>

<mosaic_0001>
module attributes {stable_mosaic.version = 11 : i64} {
  func.func @_pwff_kernel(%arg0: i32, %arg1: i32, %arg2: memref<8x128xf32, #tpu.memory_space<vmem>>, %arg3: memref<1x128xf32, #tpu.memory_space<vmem>>, %arg4: memref<1x128xf32, #tpu.memory_space<vmem>>, %arg5: memref<128x128xbf16, #tpu.memory_space<vmem>>, %arg6: memref<1x128xf32, #tpu.memory_space<vmem>>, %arg7: memref<128x128xbf16, #tpu.memory_space<vmem>>, %arg8: memref<1x128xf32, #tpu.memory_space<vmem>>, %arg9: memref<8x128xf32, #tpu.memory_space<vmem>>, %arg10: memref<8x128xbf16, #tpu.memory_space<vmem>>, %arg11: memref<8x128xf32, #tpu.memory_space<vmem>>) attributes {dimension_semantics = [#tpu.dimension_semantics<parallel>, #tpu.dimension_semantics<arbitrary>], iteration_bounds = array<i64: 2, 1>, scalar_prefetch = 0 : i64, scratch_operands = 2 : i64, tpu.core_type = #tpu.core_type<tc>, window_params = [{transform_indices = @transform_0, window_bounds = array<i64: 8, 128>}, {pipeline_mode = #tpu.pipeline_mode<synchronous>, transform_indices = @transform_1, window_bounds = array<i64: 1, 128>}, {pipeline_mode = #tpu.pipeline_mode<synchronous>, transform_indices = @transform_2, window_bounds = array<i64: 1, 128>}, {pipeline_mode = #tpu.pipeline_mode<synchronous>, transform_indices = @transform_3, window_bounds = array<i64: 128, 128>}, {pipeline_mode = #tpu.pipeline_mode<synchronous>, transform_indices = @transform_4, window_bounds = array<i64: 1, 128>}, {pipeline_mode = #tpu.pipeline_mode<synchronous>, transform_indices = @transform_5, window_bounds = array<i64: 128, 128>}, {pipeline_mode = #tpu.pipeline_mode<synchronous>, transform_indices = @transform_6, window_bounds = array<i64: 1, 128>}, {transform_indices = @transform_7, window_bounds = array<i64: 8, 128>}]} {
    %c0_i32 = arith.constant 0 : i32
    %0 = arith.cmpi eq, %arg1, %c0_i32 : i32
    %1 = arith.extui %0 : i1 to i32
    %c0_i32_0 = arith.constant 0 : i32
    %2 = arith.cmpi ne, %1, %c0_i32_0 : i32
    scf.if %2 {
      %c0_16 = arith.constant 0 : index
      %c0_17 = arith.constant 0 : index
      %20 = vector.load %arg2[%c0_16, %c0_17] : memref<8x128xf32, #tpu.memory_space<vmem>>, vector<8x128xf32>
      %cst_18 = arith.constant dense<0.000000e+00> : vector<8xf32>
      %21 = vector.multi_reduction <add>, %20, %cst_18 [1] : vector<8x128xf32> to vector<8xf32>
      %22 = vector.shape_cast %21 : vector<8xf32> to vector<8x1xf32>
      %cst_19 = arith.constant 3.125000e-02 : f32
      %23 = vector.broadcast %cst_19 : f32 to vector<8x1xf32>
      %24 = arith.mulf %22, %23 : vector<8x1xf32>
      %25 = vector.broadcast %24 : vector<8x1xf32> to vector<8x128xf32>
      %26 = arith.subf %20, %25 : vector<8x128xf32>
      %27 = tpu.iota {dimensions = array<i32: 1>} : vector<1x128xi32>
      %c32_i32 = arith.constant 32 : i32
      %28 = vector.broadcast %c32_i32 : i32 to vector<1x128xi32>
      %29 = arith.cmpi slt, %27, %28 : vector<1x128xi32>
      %cst_20 = arith.constant 0.000000e+00 : f32
      %30 = vector.shape_cast %29 : vector<1x128xi1> to vector<1x128xi1>
      %31 = vector.broadcast %30 : vector<1x128xi1> to vector<8x128xi1>
      %32 = vector.broadcast %cst_20 : f32 to vector<8x128xf32>
      %33 = arith.select %31, %26, %32 : vector<8x128xi1>, vector<8x128xf32>
      %34 = arith.mulf %33, %33 : vector<8x128xf32>
      %cst_21 = arith.constant dense<0.000000e+00> : vector<8xf32>
      %35 = vector.multi_reduction <add>, %34, %cst_21 [1] : vector<8x128xf32> to vector<8xf32>
      %36 = vector.shape_cast %35 : vector<8xf32> to vector<8x1xf32>
      %cst_22 = arith.constant 3.125000e-02 : f32
      %37 = vector.broadcast %cst_22 : f32 to vector<8x1xf32>
      %38 = arith.mulf %36, %37 : vector<8x1xf32>
      %cst_23 = arith.constant 9.99999997E-7 : f32
      %39 = vector.broadcast %cst_23 : f32 to vector<8x1xf32>
      %40 = arith.addf %38, %39 : vector<8x1xf32>
      %41 = math.rsqrt %40 : vector<8x1xf32>
      %42 = vector.broadcast %41 : vector<8x1xf32> to vector<8x128xf32>
      %43 = arith.mulf %26, %42 : vector<8x128xf32>
      %c0_24 = arith.constant 0 : index
      %c0_25 = arith.constant 0 : index
      %44 = vector.load %arg3[%c0_24, %c0_25] : memref<1x128xf32, #tpu.memory_space<vmem>>, vector<1x128xf32>
      %45 = vector.broadcast %44 : vector<1x128xf32> to vector<8x128xf32>
      %46 = arith.mulf %43, %45 : vector<8x128xf32>
      %c0_26 = arith.constant 0 : index
      %c0_27 = arith.constant 0 : index
      %47 = vector.load %arg4[%c0_26, %c0_27] : memref<1x128xf32, #tpu.memory_space<vmem>>, vector<1x128xf32>
      %48 = vector.broadcast %47 : vector<1x128xf32> to vector<8x128xf32>
      %49 = arith.addf %46, %48 : vector<8x128xf32>
      %50 = arith.truncf %49 : vector<8x128xf32> to vector<8x128xbf16>
      %c0_28 = arith.constant 0 : index
      %c0_29 = arith.constant 0 : index
      %51 = vector.load %arg10[%c0_28, %c0_29] : memref<8x128xbf16, #tpu.memory_space<vmem>>, vector<8x128xbf16>
      tpu.vector_store %arg10[%c0_28, %c0_29], %50 {strides = array<i32>} : memref<8x128xbf16, #tpu.memory_space<vmem>>, vector<8x128xbf16>,
      %cst_30 = arith.constant 0.000000e+00 : f32
      %52 = vector.broadcast %cst_30 : f32 to vector<8x128xf32>
      %c0_31 = arith.constant 0 : index
      %c0_32 = arith.constant 0 : index
      %53 = vector.load %arg11[%c0_31, %c0_32] : memref<8x128xf32, #tpu.memory_space<vmem>>, vector<8x128xf32>
      tpu.vector_store %arg11[%c0_31, %c0_32], %52 {strides = array<i32>} : memref<8x128xf32, #tpu.memory_space<vmem>>, vector<8x128xf32>,
    } else {
    }
    %c0 = arith.constant 0 : index
    %c0_1 = arith.constant 0 : index
    %3 = vector.load %arg10[%c0, %c0_1] : memref<8x128xbf16, #tpu.memory_space<vmem>>, vector<8x128xbf16>
    %c0_2 = arith.constant 0 : index
    %c0_3 = arith.constant 0 : index
    %4 = vector.load %arg5[%c0_2, %c0_3] : memref<128x128xbf16, #tpu.memory_space<vmem>>, vector<128x128xbf16>
    %cst = arith.constant dense<0.000000e+00> : vector<8x128xf32>
    %5 = tpu.matmul %3, %4, %cst {dimension_numbers = #tpu.dot_dimension_numbers<[1], [0], [0], [1], [0, 0, 1, 1], [], []>} : vector<8x128xbf16>, vector<128x128xbf16>, vector<8x128xf32> -> vector<8x128xf32>
    %c0_4 = arith.constant 0 : index
    %c0_5 = arith.constant 0 : index
    %6 = vector.load %arg6[%c0_4, %c0_5] : memref<1x128xf32, #tpu.memory_space<vmem>>, vector<1x128xf32>
    %7 = vector.broadcast %6 : vector<1x128xf32> to vector<8x128xf32>
    %8 = arith.addf %5, %7 : vector<8x128xf32>
    %cst_6 = arith.constant 0.000000e+00 : f32
    %9 = vector.broadcast %cst_6 : f32 to vector<8x128xf32>
    %10 = arith.maximumf %8, %9 : vector<8x128xf32>
    %c0_7 = arith.constant 0 : index
    %c0_8 = arith.constant 0 : index
    %11 = vector.load %arg11[%c0_7, %c0_8] : memref<8x128xf32, #tpu.memory_space<vmem>>, vector<8x128xf32>
    %12 = arith.truncf %10 : vector<8x128xf32> to vector<8x128xbf16>
    %c0_9 = arith.constant 0 : index
    %c0_10 = arith.constant 0 : index
    %13 = vector.load %arg7[%c0_9, %c0_10] : memref<128x128xbf16, #tpu.memory_space<vmem>>, vector<128x128xbf16>
    %cst_11 = arith.constant dense<0.000000e+00> : vector<8x128xf32>
    %14 = tpu.matmul %12, %13, %cst_11 {dimension_numbers = #tpu.dot_dimension_numbers<[1], [0], [0], [1], [0, 0, 1, 1], [], []>} : vector<8x128xbf16>, vector<128x128xbf16>, vector<8x128xf32> -> vector<8x128xf32>
    %15 = arith.addf %11, %14 : vector<8x128xf32>
    %c0_12 = arith.constant 0 : index
    %c0_13 = arith.constant 0 : index
    %16 = vector.load %arg11[%c0_12, %c0_13] : memref<8x128xf32, #tpu.memory_space<vmem>>, vector<8x128xf32>
    tpu.vector_store %arg11[%c0_12, %c0_13], %15 {strides = array<i32>} : memref<8x128xf32, #tpu.memory_space<vmem>>, vector<8x128xf32>,
    %c0_i32_14 = arith.constant 0 : i32
    %17 = arith.cmpi eq, %arg1, %c0_i32_14 : i32
    %18 = arith.extui %17 : i1 to i32
    %c0_i32_15 = arith.constant 0 : i32
    %19 = arith.cmpi ne, %18, %c0_i32_15 : i32
    scf.if %19 {
      %c0_16 = arith.constant 0 : index
      %c0_17 = arith.constant 0 : index
      %20 = vector.load %arg11[%c0_16, %c0_17] : memref<8x128xf32, #tpu.memory_space<vmem>>, vector<8x128xf32>
      %c0_18 = arith.constant 0 : index
      %c0_19 = arith.constant 0 : index
      %21 = vector.load %arg8[%c0_18, %c0_19] : memref<1x128xf32, #tpu.memory_space<vmem>>, vector<1x128xf32>
      %22 = vector.broadcast %21 : vector<1x128xf32> to vector<8x128xf32>
      %23 = arith.addf %20, %22 : vector<8x128xf32>
      %c0_20 = arith.constant 0 : index
      %c0_21 = arith.constant 0 : index
      %24 = vector.load %arg2[%c0_20, %c0_21] : memref<8x128xf32, #tpu.memory_space<vmem>>, vector<8x128xf32>
      %25 = arith.addf %23, %24 : vector<8x128xf32>
      %c0_22 = arith.constant 0 : index
      %c0_23 = arith.constant 0 : index
      %26 = vector.load %arg9[%c0_22, %c0_23] : memref<8x128xf32, #tpu.memory_space<vmem>>, vector<8x128xf32>
      tpu.vector_store %arg9[%c0_22, %c0_23], %25 {strides = array<i32>} : memref<8x128xf32, #tpu.memory_space<vmem>>, vector<8x128xf32>,
    } else {
    }
    return
  }
  func.func @transform_0(%arg0: i32, %arg1: i32) -> (i32, i32) {
    %c0_i32 = arith.constant 0 : i32
    %c0_i32_0 = arith.constant 0 : i32
    return %arg0, %c0_i32 : i32, i32
  }
  func.func @transform_1(%arg0: i32, %arg1: i32) -> (i32, i32) {
    %c0_i32 = arith.constant 0 : i32
    %c0_i32_0 = arith.constant 0 : i32
    %c0_i32_1 = arith.constant 0 : i32
    return %c0_i32, %c0_i32_0 : i32, i32
  }
  func.func @transform_2(%arg0: i32, %arg1: i32) -> (i32, i32) {
    %c0_i32 = arith.constant 0 : i32
    %c0_i32_0 = arith.constant 0 : i32
    %c0_i32_1 = arith.constant 0 : i32
    return %c0_i32, %c0_i32_0 : i32, i32
  }
  func.func @transform_3(%arg0: i32, %arg1: i32) -> (i32, i32) {
    %c0_i32 = arith.constant 0 : i32
    %c0_i32_0 = arith.constant 0 : i32
    return %c0_i32, %arg1 : i32, i32
  }
  func.func @transform_4(%arg0: i32, %arg1: i32) -> (i32, i32) {
    %c0_i32 = arith.constant 0 : i32
    %c0_i32_0 = arith.constant 0 : i32
    return %c0_i32, %arg1 : i32, i32
  }
  func.func @transform_5(%arg0: i32, %arg1: i32) -> (i32, i32) {
    %c0_i32 = arith.constant 0 : i32
    %c0_i32_0 = arith.constant 0 : i32
    return %arg1, %c0_i32 : i32, i32
  }
  func.func @transform_6(%arg0: i32, %arg1: i32) -> (i32, i32) {
    %c0_i32 = arith.constant 0 : i32
    %c0_i32_0 = arith.constant 0 : i32
    %c0_i32_1 = arith.constant 0 : i32
    return %c0_i32, %c0_i32_0 : i32, i32
  }
  func.func @transform_7(%arg0: i32, %arg1: i32) -> (i32, i32) {
    %c0_i32 = arith.constant 0 : i32
    %c0_i32_0 = arith.constant 0 : i32
    return %arg0, %c0_i32 : i32, i32
  }
}

module attributes {stable_mosaic.version = 11 : i64} {
  func.func @_pwff_kernel(%arg0: i32, %arg1: i32, %arg2: memref<8x128xf32, #tpu.memory_space<vmem>>, %arg3: memref<1x128xf32, #tpu.memory_space<vmem>>, %arg4: memref<1x128xf32, #tpu.memory_space<vmem>>, %arg5: memref<128x128xbf16, #tpu.memory_space<vmem>>, %arg6: memref<1x128xf32, #tpu.memory_space<vmem>>, %arg7: memref<128x128xbf16, #tpu.memory_space<vmem>>, %arg8: memref<1x128xf32, #tpu.memory_space<vmem>>, %arg9: memref<8x128xf32, #tpu.memory_space<vmem>>, %arg10: memref<8x128xbf16, #tpu.memory_space<vmem>>, %arg11: memref<8x128xf32, #tpu.memory_space<vmem>>) attributes {dimension_semantics = [#tpu.dimension_semantics<parallel>, #tpu.dimension_semantics<arbitrary>], iteration_bounds = array<i64: 2, 1>, scalar_prefetch = 0 : i64, scratch_operands = 2 : i64, tpu.core_type = #tpu.core_type<tc>, window_params = [{transform_indices = @transform_0, window_bounds = array<i64: 8, 128>}, {pipeline_mode = #tpu.pipeline_mode<synchronous>, transform_indices = @transform_1, window_bounds = array<i64: 1, 128>}, {pipeline_mode = #tpu.pipeline_mode<synchronous>, transform_indices = @transform_2, window_bounds = array<i64: 1, 128>}, {transform_indices = @transform_3, window_bounds = array<i64: 128, 128>}, {transform_indices = @transform_4, window_bounds = array<i64: 1, 128>}, {transform_indices = @transform_5, window_bounds = array<i64: 128, 128>}, {pipeline_mode = #tpu.pipeline_mode<synchronous>, transform_indices = @transform_6, window_bounds = array<i64: 1, 128>}, {transform_indices = @transform_7, window_bounds = array<i64: 8, 128>}]} {
    %c0_i32 = arith.constant 0 : i32
    %0 = arith.cmpi eq, %arg1, %c0_i32 : i32
    %1 = arith.extui %0 : i1 to i32
    %c0_i32_0 = arith.constant 0 : i32
    %2 = arith.cmpi ne, %1, %c0_i32_0 : i32
    scf.if %2 {
      %c0_16 = arith.constant 0 : index
      %c0_17 = arith.constant 0 : index
      %20 = vector.load %arg2[%c0_16, %c0_17] : memref<8x128xf32, #tpu.memory_space<vmem>>, vector<8x128xf32>
      %cst_18 = arith.constant dense<0.000000e+00> : vector<8xf32>
      %21 = vector.multi_reduction <add>, %20, %cst_18 [1] : vector<8x128xf32> to vector<8xf32>
      %22 = vector.shape_cast %21 : vector<8xf32> to vector<8x1xf32>
      %cst_19 = arith.constant 3.125000e-02 : f32
      %23 = vector.broadcast %cst_19 : f32 to vector<8x1xf32>
      %24 = arith.mulf %22, %23 : vector<8x1xf32>
      %25 = vector.broadcast %24 : vector<8x1xf32> to vector<8x128xf32>
      %26 = arith.subf %20, %25 : vector<8x128xf32>
      %27 = tpu.iota {dimensions = array<i32: 1>} : vector<1x128xi32>
      %c32_i32 = arith.constant 32 : i32
      %28 = vector.broadcast %c32_i32 : i32 to vector<1x128xi32>
      %29 = arith.cmpi slt, %27, %28 : vector<1x128xi32>
      %cst_20 = arith.constant 0.000000e+00 : f32
      %30 = vector.shape_cast %29 : vector<1x128xi1> to vector<1x128xi1>
      %31 = vector.broadcast %30 : vector<1x128xi1> to vector<8x128xi1>
      %32 = vector.broadcast %cst_20 : f32 to vector<8x128xf32>
      %33 = arith.select %31, %26, %32 : vector<8x128xi1>, vector<8x128xf32>
      %34 = arith.mulf %33, %33 : vector<8x128xf32>
      %cst_21 = arith.constant dense<0.000000e+00> : vector<8xf32>
      %35 = vector.multi_reduction <add>, %34, %cst_21 [1] : vector<8x128xf32> to vector<8xf32>
      %36 = vector.shape_cast %35 : vector<8xf32> to vector<8x1xf32>
      %cst_22 = arith.constant 3.125000e-02 : f32
      %37 = vector.broadcast %cst_22 : f32 to vector<8x1xf32>
      %38 = arith.mulf %36, %37 : vector<8x1xf32>
      %cst_23 = arith.constant 9.99999997E-7 : f32
      %39 = vector.broadcast %cst_23 : f32 to vector<8x1xf32>
      %40 = arith.addf %38, %39 : vector<8x1xf32>
      %41 = math.rsqrt %40 : vector<8x1xf32>
      %42 = vector.broadcast %41 : vector<8x1xf32> to vector<8x128xf32>
      %43 = arith.mulf %26, %42 : vector<8x128xf32>
      %c0_24 = arith.constant 0 : index
      %c0_25 = arith.constant 0 : index
      %44 = vector.load %arg3[%c0_24, %c0_25] : memref<1x128xf32, #tpu.memory_space<vmem>>, vector<1x128xf32>
      %45 = vector.broadcast %44 : vector<1x128xf32> to vector<8x128xf32>
      %46 = arith.mulf %43, %45 : vector<8x128xf32>
      %c0_26 = arith.constant 0 : index
      %c0_27 = arith.constant 0 : index
      %47 = vector.load %arg4[%c0_26, %c0_27] : memref<1x128xf32, #tpu.memory_space<vmem>>, vector<1x128xf32>
      %48 = vector.broadcast %47 : vector<1x128xf32> to vector<8x128xf32>
      %49 = arith.addf %46, %48 : vector<8x128xf32>
      %50 = arith.truncf %49 : vector<8x128xf32> to vector<8x128xbf16>
      %c0_28 = arith.constant 0 : index
      %c0_29 = arith.constant 0 : index
      %51 = vector.load %arg10[%c0_28, %c0_29] : memref<8x128xbf16, #tpu.memory_space<vmem>>, vector<8x128xbf16>
      tpu.vector_store %arg10[%c0_28, %c0_29], %50 {strides = array<i32>} : memref<8x128xbf16, #tpu.memory_space<vmem>>, vector<8x128xbf16>,
      %cst_30 = arith.constant 0.000000e+00 : f32
      %52 = vector.broadcast %cst_30 : f32 to vector<8x128xf32>
      %c0_31 = arith.constant 0 : index
      %c0_32 = arith.constant 0 : index
      %53 = vector.load %arg11[%c0_31, %c0_32] : memref<8x128xf32, #tpu.memory_space<vmem>>, vector<8x128xf32>
      tpu.vector_store %arg11[%c0_31, %c0_32], %52 {strides = array<i32>} : memref<8x128xf32, #tpu.memory_space<vmem>>, vector<8x128xf32>,
    } else {
    }
    %c0 = arith.constant 0 : index
    %c0_1 = arith.constant 0 : index
    %3 = vector.load %arg10[%c0, %c0_1] : memref<8x128xbf16, #tpu.memory_space<vmem>>, vector<8x128xbf16>
    %c0_2 = arith.constant 0 : index
    %c0_3 = arith.constant 0 : index
    %4 = vector.load %arg5[%c0_2, %c0_3] : memref<128x128xbf16, #tpu.memory_space<vmem>>, vector<128x128xbf16>
    %cst = arith.constant dense<0.000000e+00> : vector<8x128xf32>
    %5 = tpu.matmul %3, %4, %cst {dimension_numbers = #tpu.dot_dimension_numbers<[1], [0], [0], [1], [0, 0, 1, 1], [], []>} : vector<8x128xbf16>, vector<128x128xbf16>, vector<8x128xf32> -> vector<8x128xf32>
    %c0_4 = arith.constant 0 : index
    %c0_5 = arith.constant 0 : index
    %6 = vector.load %arg6[%c0_4, %c0_5] : memref<1x128xf32, #tpu.memory_space<vmem>>, vector<1x128xf32>
    %7 = vector.broadcast %6 : vector<1x128xf32> to vector<8x128xf32>
    %8 = arith.addf %5, %7 : vector<8x128xf32>
    %cst_6 = arith.constant 0.000000e+00 : f32
    %9 = vector.broadcast %cst_6 : f32 to vector<8x128xf32>
    %10 = arith.maximumf %8, %9 : vector<8x128xf32>
    %c0_7 = arith.constant 0 : index
    %c0_8 = arith.constant 0 : index
    %11 = vector.load %arg11[%c0_7, %c0_8] : memref<8x128xf32, #tpu.memory_space<vmem>>, vector<8x128xf32>
    %12 = arith.truncf %10 : vector<8x128xf32> to vector<8x128xbf16>
    %c0_9 = arith.constant 0 : index
    %c0_10 = arith.constant 0 : index
    %13 = vector.load %arg7[%c0_9, %c0_10] : memref<128x128xbf16, #tpu.memory_space<vmem>>, vector<128x128xbf16>
    %cst_11 = arith.constant dense<0.000000e+00> : vector<8x128xf32>
    %14 = tpu.matmul %12, %13, %cst_11 {dimension_numbers = #tpu.dot_dimension_numbers<[1], [0], [0], [1], [0, 0, 1, 1], [], []>} : vector<8x128xbf16>, vector<128x128xbf16>, vector<8x128xf32> -> vector<8x128xf32>
    %15 = arith.addf %11, %14 : vector<8x128xf32>
    %c0_12 = arith.constant 0 : index
    %c0_13 = arith.constant 0 : index
    %16 = vector.load %arg11[%c0_12, %c0_13] : memref<8x128xf32, #tpu.memory_space<vmem>>, vector<8x128xf32>
    tpu.vector_store %arg11[%c0_12, %c0_13], %15 {strides = array<i32>} : memref<8x128xf32, #tpu.memory_space<vmem>>, vector<8x128xf32>,
    %c0_i32_14 = arith.constant 0 : i32
    %17 = arith.cmpi eq, %arg1, %c0_i32_14 : i32
    %18 = arith.extui %17 : i1 to i32
    %c0_i32_15 = arith.constant 0 : i32
    %19 = arith.cmpi ne, %18, %c0_i32_15 : i32
    scf.if %19 {
      %c0_16 = arith.constant 0 : index
      %c0_17 = arith.constant 0 : index
      %20 = vector.load %arg11[%c0_16, %c0_17] : memref<8x128xf32, #tpu.memory_space<vmem>>, vector<8x128xf32>
      %c0_18 = arith.constant 0 : index
      %c0_19 = arith.constant 0 : index
      %21 = vector.load %arg8[%c0_18, %c0_19] : memref<1x128xf32, #tpu.memory_space<vmem>>, vector<1x128xf32>
      %22 = vector.broadcast %21 : vector<1x128xf32> to vector<8x128xf32>
      %23 = arith.addf %20, %22 : vector<8x128xf32>
      %c0_20 = arith.constant 0 : index
      %c0_21 = arith.constant 0 : index
      %24 = vector.load %arg2[%c0_20, %c0_21] : memref<8x128xf32, #tpu.memory_space<vmem>>, vector<8x128xf32>
      %25 = arith.addf %23, %24 : vector<8x128xf32>
      %c0_22 = arith.constant 0 : index
      %c0_23 = arith.constant 0 : index
      %26 = vector.load %arg9[%c0_22, %c0_23] : memref<8x128xf32, #tpu.memory_space<vmem>>, vector<8x128xf32>
      tpu.vector_store %arg9[%c0_22, %c0_23], %25 {strides = array<i32>} : memref<8x128xf32, #tpu.memory_space<vmem>>, vector<8x128xf32>,
    } else {
    }
    return
  }
  func.func @transform_0(%arg0: i32, %arg1: i32) -> (i32, i32) {
    %c0_i32 = arith.constant 0 : i32
    %c0_i32_0 = arith.constant 0 : i32
    return %arg0, %c0_i32 : i32, i32
  }
  func.func @transform_1(%arg0: i32, %arg1: i32) -> (i32, i32) {
    %c0_i32 = arith.constant 0 : i32
    %c0_i32_0 = arith.constant 0 : i32
    %c0_i32_1 = arith.constant 0 : i32
    return %c0_i32, %c0_i32_0 : i32, i32
  }
  func.func @transform_2(%arg0: i32, %arg1: i32) -> (i32, i32) {
    %c0_i32 = arith.constant 0 : i32
    %c0_i32_0 = arith.constant 0 : i32
    %c0_i32_1 = arith.constant 0 : i32
    return %c0_i32, %c0_i32_0 : i32, i32
  }
  func.func @transform_3(%arg0: i32, %arg1: i32) -> (i32, i32) {
    %c0_i32 = arith.constant 0 : i32
    %c0_i32_0 = arith.constant 0 : i32
    return %c0_i32, %arg1 : i32, i32
  }
  func.func @transform_4(%arg0: i32, %arg1: i32) -> (i32, i32) {
    %c0_i32 = arith.constant 0 : i32
    %c0_i32_0 = arith.constant 0 : i32
    return %c0_i32, %arg1 : i32, i32
  }
  func.func @transform_5(%arg0: i32, %arg1: i32) -> (i32, i32) {
    %c0_i32 = arith.constant 0 : i32
    %c0_i32_0 = arith.constant 0 : i32
    return %arg1, %c0_i32 : i32, i32
  }
  func.func @transform_6(%arg0: i32, %arg1: i32) -> (i32, i32) {
    %c0_i32 = arith.constant 0 : i32
    %c0_i32_0 = arith.constant 0 : i32
    %c0_i32_1 = arith.constant 0 : i32
    return %c0_i32, %c0_i32_0 : i32, i32
  }
  func.func @transform_7(%arg0: i32, %arg1: i32) -> (i32, i32) {
    %c0_i32 = arith.constant 0 : i32
    %c0_i32_0 = arith.constant 0 : i32
    return %arg0, %c0_i32 : i32, i32
  }
}

</mosaic_0001>

<llo_original>
// kernel: tpu_custom_call.1
$region0: #{tpu_custom_call.1}
  #allocation0 [shape = 'u32[]', space=smem, size = 0x4, offset = 0x4, fixed_abs, tag = 'smem constant byte address 0x4 - core index']
  #allocation1 [shape = 'u32[72,128]{1,0:T(1,128)}', space=vmem, size = 0x9000, scoped, tag = 'internal scratch']
  #allocation2 [shape = 'bf16[8,128]{1,0:T(8,128)(2,1)}', space=vmem, size = 0x800, scoped, tag = 'scratch operand']
  #allocation3 [shape = 'f32[8,128]{1,0:T(8,128)}', space=vmem, size = 0x1000, scoped, tag = 'scratch operand']
  %s0 = inlined_call_operand.hbm [shape: f32[16,128], index: 0, kind: input, shape index: {}]
  %s1 = inlined_call_operand.hbm [shape: f32[1,128], index: 1, kind: input, shape index: {}]
  %s2 = inlined_call_operand.vmem [shape: f32[1,128], index: 2, kind: input, shape index: {}]
  %s3 = inlined_call_operand.hbm [shape: bf16[128,128], index: 3, kind: input, shape index: {}]
  %s4 = inlined_call_operand.vmem [shape: f32[1,128], index: 4, kind: input, shape index: {}]
  %s5 = inlined_call_operand.hbm [shape: bf16[128,128], index: 5, kind: input, shape index: {}]
  %s6 = inlined_call_operand.vmem [shape: f32[1,128], index: 6, kind: input, shape index: {}]
  %s7 = inlined_call_operand.hbm [shape: f32[16,128], index: 7, kind: output, shape index: {}]
  %s8 = sld [smem:[#allocation0]]
  $region85: #{tpu_custom_call.1} parent=0
    _
  %s10 = ssub.s32 1, %s8
  %s11 = scalar_select 0, %s10, %s8
  $region1: #{tpu_custom_call.1} parent=0
    #allocation4 [shape = 'u8[8192]{0}', space=vmem, size = 0x2000, scoped, tag = 'input window, operand 0']
    #allocation5 [shape = 's32[2]{0}', space=sflag, size = 0x8, scoped, tag = 'scoped memory for tpu_custom_call.1']
    #allocation6 [shape = 's32[2]{0}', space=sflag, size = 0x8, scoped, tag = 'scoped memory for tpu_custom_call.1']
    #allocation7 [shape = 'u8[512]{0}', space=vmem, size = 0x400, scoped, tag = 'input window, operand 1, single buffered']
    #allocation8 [shape = 's32[1]{0}', space=sflag, size = 0x4, scoped, tag = 'scoped memory for tpu_custom_call.1']
    #allocation9 [shape = 'u8[32768]{0}', space=vmem, size = 0x8000, scoped, tag = 'input window, operand 3, single buffered']
    #allocation10 [shape = 'u8[32768]{0}', space=vmem, size = 0x8000, scoped, tag = 'input window, operand 5, single buffered']
    #allocation11 [shape = 's32[1]{0}', space=sflag, size = 0x4, scoped, tag = 'scoped memory for tpu_custom_call.1']
    #allocation12 [shape = 'u8[8192]{0}', space=vmem, size = 0x2000, scoped, tag = 'output window, operand 0']
    %12 = vsyncpa [#allocation5], 0
    %s13 = scalar_lea.sflag [#allocation5], 1
    %14 = vsyncpa %s13, 0
    %15 = vsyncpa [#allocation8], 0
    %16 = vsyncpa [#allocation11], 0
    %17 = vsyncpa [#allocation6], 0
    %s18 = scalar_lea.sflag [#allocation6], 1
    %19 = vsyncpa %s18, 0
    loop: start=0, step=1, limit=4
    $region2: #{tpu_custom_call.1} parent=1 // loop_pre_header
      _
    $region3: #{tpu_custom_call.1} parent=1 // loop_header
      %s21 = sphi 0, %s25
      %p22 = scmp.ge.s32.totalorder %s21, 4
      %s28 = sphi 0, %s40
      %s29 = sphi 0, %s36
      %s30 = sphi 0, %s28
      %s31 = sphi 0, %s29
      %s32 = sphi 0, %s30
      %s33 = sphi 0, %s31
      %s43 = sphi 0, %s45
      %s46 = sphi 0, %s43
      %s47 = sphi 0, %s46
      %s63 = sphi 0, %s47
      %s67 = sphi 0, %s67
      %s69 = sphi 0, %s67
      %s70 = sphi 0, %s69
      %s84 = sphi 0, %s70
      %s88 = sphi 0, %s88
      %s90 = sphi 0, %s88
      %s91 = sphi 0, %s90
      %s105 = sphi 0, %s91
      %s111 = sphi 0, %s113
      %s114 = sphi 0, %s111
      %s115 = sphi 0, %s114
      %s131 = sphi 0, %s115
      %s137 = sphi 0, %s139
      %s140 = sphi 0, %s137
      %s141 = sphi 0, %s140
      %s157 = sphi 0, %s141
      %s163 = sphi 0, %s165
      %s166 = sphi 0, %s163
      %s167 = sphi 0, %s166
      %s183 = sphi 0, %s167
      %s187 = sphi 0, %s187
      %s189 = sphi 0, %s187
      %s190 = sphi 0, %s189
      %s204 = sphi 0, %s190
      %s210 = sphi 0, %s212
      %s213 = sphi 0, %s210
      %s214 = sphi 0, %s213
      %s230 = sphi 0, %s214
    $region4: #{tpu_custom_call.1} parent=1 // loop_header_branch
      %24 = sbr.rel (%p22) target = $region8
    $region5: #{tpu_custom_call.1} parent=1 // loop_body
      %s26 = ssub.s32 %s21, 1
      %s27 = ssub.s32 %s21, 2
      %s34 = sadd.s32 1, %s29
      %p35 = scmp.ge.s32.totalorder %s34, 1
      %s36 = scalar_select %p35, 0, %s34
      %s37 = sadd.s32 1, %s28
      %s38 = scalar_select %p35, %s37, %s28
      %p39 = scmp.ge.s32.totalorder %s38, 2
      %s40 = scalar_select %p39, 0, %s38
      %s41 = ssub.s32 %s28, %s40
      %p42 = scmp.eq.s32.totalorder %s41, 0
      %s44 = sadd.s32 %s43, 1
      %s45 = scalar_select %p42, %s43, %s44
      %p48 = pneg %p42
      %p49 = scmp.eq.s32.totalorder %s21, 1
      %p50 = por %p48, %p49
      %p51 = scmp.ne.s32.totalorder %s43, %s46
      %p52 = scmp.eq.s32.totalorder %s21, 0
      %p53 = por %p51, %p52
      %p54 = scmp.ne.s32.totalorder %s43, %s46
      %p55 = scmp.eq.s32.totalorder %s26, 1
      %p56 = por %p54, %p55
      %p57 = scmp.ne.s32.totalorder %s46, %s47
      %p58 = scmp.eq.s32.totalorder %s26, 0
      %p59 = por %p57, %p58
      %p60 = scmp.ne.s32.totalorder %s46, %s47
      %p61 = scmp.eq.s32.totalorder %s27, 1
      %p62 = por %p60, %p61
      %p64 = scmp.ne.s32.totalorder %s47, %s63
      %p65 = scmp.eq.s32.totalorder %s27, 0
      %p66 = por %p64, %p65
      %s68 = sadd.s32 %s67, 1
      %p71 = scmp.eq.s32.totalorder %s21, 1
      %p72 = scmp.ne.s32.totalorder %s67, %s69
      %p73 = scmp.eq.s32.totalorder %s21, 0
      %p74 = por %p72, %p73
      %p75 = scmp.ne.s32.totalorder %s67, %s69
      %p76 = scmp.eq.s32.totalorder %s26, 1
      %p77 = por %p75, %p76
      %p78 = scmp.ne.s32.totalorder %s69, %s70
      %p79 = scmp.eq.s32.totalorder %s26, 0
      %p80 = por %p78, %p79
      %p81 = scmp.ne.s32.totalorder %s69, %s70
      %p82 = scmp.eq.s32.totalorder %s27, 1
      %p83 = por %p81, %p82
      %p85 = scmp.ne.s32.totalorder %s70, %s84
      %p86 = scmp.eq.s32.totalorder %s27, 0
      %p87 = por %p85, %p86
      %s89 = sadd.s32 %s88, 1
      %p92 = scmp.eq.s32.totalorder %s21, 1
      %p93 = scmp.ne.s32.totalorder %s88, %s90
      %p94 = scmp.eq.s32.totalorder %s21, 0
      %p95 = por %p93, %p94
      %p96 = scmp.ne.s32.totalorder %s88, %s90
      %p97 = scmp.eq.s32.totalorder %s26, 1
      %p98 = por %p96, %p97
      %p99 = scmp.ne.s32.totalorder %s90, %s91
      %p100 = scmp.eq.s32.totalorder %s26, 0
      %p101 = por %p99, %p100
      %p102 = scmp.ne.s32.totalorder %s90, %s91
      %p103 = scmp.eq.s32.totalorder %s27, 1
      %p104 = por %p102, %p103
      %p106 = scmp.ne.s32.totalorder %s91, %s105
      %p107 = scmp.eq.s32.totalorder %s27, 0
      %p108 = por %p106, %p107
      %s109 = ssub.s32 %s29, %s36
      %p110 = scmp.eq.s32.totalorder %s109, 0
      %s112 = sadd.s32 %s111, 1
      %s113 = scalar_select %p110, %s111, %s112
      %p116 = pneg %p110
      %p117 = scmp.eq.s32.totalorder %s21, 1
      %p118 = por %p116, %p117
      %p119 = scmp.ne.s32.totalorder %s111, %s114
      %p120 = scmp.eq.s32.totalorder %s21, 0
      %p121 = por %p119, %p120
      %p122 = scmp.ne.s32.totalorder %s111, %s114
      %p123 = scmp.eq.s32.totalorder %s26, 1
      %p124 = por %p122, %p123
      %p125 = scmp.ne.s32.totalorder %s114, %s115
      %p126 = scmp.eq.s32.totalorder %s26, 0
      %p127 = por %p125, %p126
      %p128 = scmp.ne.s32.totalorder %s114, %s115
      %p129 = scmp.eq.s32.totalorder %s27, 1
      %p130 = por %p128, %p129
      %p132 = scmp.ne.s32.totalorder %s115, %s131
      %p133 = scmp.eq.s32.totalorder %s27, 0
      %p134 = por %p132, %p133
      %s135 = ssub.s32 %s29, %s36
      %p136 = scmp.eq.s32.totalorder %s135, 0
      %s138 = sadd.s32 %s137, 1
      %s139 = scalar_select %p136, %s137, %s138
      %p142 = pneg %p136
      %p143 = scmp.eq.s32.totalorder %s21, 1
      %p144 = por %p142, %p143
      %p145 = scmp.ne.s32.totalorder %s137, %s140
      %p146 = scmp.eq.s32.totalorder %s21, 0
      %p147 = por %p145, %p146
      %p148 = scmp.ne.s32.totalorder %s137, %s140
      %p149 = scmp.eq.s32.totalorder %s26, 1
      %p150 = por %p148, %p149
      %p151 = scmp.ne.s32.totalorder %s140, %s141
      %p152 = scmp.eq.s32.totalorder %s26, 0
      %p153 = por %p151, %p152
      %p154 = scmp.ne.s32.totalorder %s140, %s141
      %p155 = scmp.eq.s32.totalorder %s27, 1
      %p156 = por %p154, %p155
      %p158 = scmp.ne.s32.totalorder %s141, %s157
      %p159 = scmp.eq.s32.totalorder %s27, 0
      %p160 = por %p158, %p159
      %s161 = ssub.s32 %s29, %s36
      %p162 = scmp.eq.s32.totalorder %s161, 0
      %s164 = sadd.s32 %s163, 1
      %s165 = scalar_select %p162, %s163, %s164
      %p168 = pneg %p162
      %p169 = scmp.eq.s32.totalorder %s21, 1
      %p170 = por %p168, %p169
      %p171 = scmp.ne.s32.totalorder %s163, %s166
      %p172 = scmp.eq.s32.totalorder %s21, 0
      %p173 = por %p171, %p172
      %p174 = scmp.ne.s32.totalorder %s163, %s166
      %p175 = scmp.eq.s32.totalorder %s26, 1
      %p176 = por %p174, %p175
      %p177 = scmp.ne.s32.totalorder %s166, %s167
      %p178 = scmp.eq.s32.totalorder %s26, 0
      %p179 = por %p177, %p178
      %p180 = scmp.ne.s32.totalorder %s166, %s167
      %p181 = scmp.eq.s32.totalorder %s27, 1
      %p182 = por %p180, %p181
      %p184 = scmp.ne.s32.totalorder %s167, %s183
      %p185 = scmp.eq.s32.totalorder %s27, 0
      %p186 = por %p184, %p185
      %s188 = sadd.s32 %s187, 1
      %p191 = scmp.eq.s32.totalorder %s21, 1
      %p192 = scmp.ne.s32.totalorder %s187, %s189
      %p193 = scmp.eq.s32.totalorder %s21, 0
      %p194 = por %p192, %p193
      %p195 = scmp.ne.s32.totalorder %s187, %s189
      %p196 = scmp.eq.s32.totalorder %s26, 1
      %p197 = por %p195, %p196
      %p198 = scmp.ne.s32.totalorder %s189, %s190
      %p199 = scmp.eq.s32.totalorder %s26, 0
      %p200 = por %p198, %p199
      %p201 = scmp.ne.s32.totalorder %s189, %s190
      %p202 = scmp.eq.s32.totalorder %s27, 1
      %p203 = por %p201, %p202
      %p205 = scmp.ne.s32.totalorder %s190, %s204
      %p206 = scmp.eq.s32.totalorder %s27, 0
      %p207 = por %p205, %p206
      %s208 = ssub.s32 %s28, %s40
      %p209 = scmp.eq.s32.totalorder %s208, 0
      %s211 = sadd.s32 %s210, 1
      %s212 = scalar_select %p209, %s210, %s211
      %p215 = pneg %p209
      %p216 = scmp.eq.s32.totalorder %s21, 1
      %p217 = por %p215, %p216
      %p218 = scmp.ne.s32.totalorder %s210, %s213
      %p219 = scmp.eq.s32.totalorder %s21, 0
      %p220 = por %p218, %p219
      %p221 = scmp.ne.s32.totalorder %s210, %s213
      %p222 = scmp.eq.s32.totalorder %s26, 1
      %p223 = por %p221, %p222
      %p224 = scmp.ne.s32.totalorder %s213, %s214
      %p225 = scmp.eq.s32.totalorder %s26, 0
      %p226 = por %p224, %p225
      %p227 = scmp.ne.s32.totalorder %s213, %s214
      %p228 = scmp.eq.s32.totalorder %s27, 1
      %p229 = por %p227, %p228
      %p231 = scmp.ne.s32.totalorder %s214, %s230
      %p232 = scmp.eq.s32.totalorder %s27, 0
      %p233 = por %p231, %p232
      %p234 = scmp.le.s32.totalorder 1, %s21
      %p235 = scmp.lt.s32.totalorder %s21, 3
      %p236 = pnand %p234, %p235
      %p237 = pneg %p236
      // Predicated region
      $region9: #{tpu_custom_call.1} parent=5 // pred_check
        _
      $region10: #{tpu_custom_call.1} parent=5 // pred_check_branch
        %239 = sbr.rel (%p236) target = $region12
      $region11: #{tpu_custom_call.1} parent=5 // pred_region
        %s240 = ssub.s32 %s21, 1
        // Predicated region
        $region13: #{tpu_custom_call.1} parent=11 // pred_check
          %p241 = pneg %p80
        $region14: #{tpu_custom_call.1} parent=11 // pred_check_branch
          %243 = sbr.rel (%p241) target = $region16
        $region15: #{tpu_custom_call.1} parent=11 // pred_region
          %245 = vsyncadd [#allocation8], 0
          %s247 = sshll.u32 %s1, 4
          %s248 = int_to_ptr.hbm [resolvable:$true] %s247
          %s249 = sshll.u32 [#allocation7], 4
          %s250 = int_to_ptr.vmem [resolvable:$true] %s249
          %252 = dma.hbm_to_vmem [thread:$0]  %s248, 16, %s250, [#allocation8]
        $region16: #{tpu_custom_call.1} parent=11 // pred_fallthru
          _
        // Predicated region
        $region17: #{tpu_custom_call.1} parent=11 // pred_check
          %p253 = pneg %p101
        $region18: #{tpu_custom_call.1} parent=11 // pred_check_branch
          %255 = sbr.rel (%p253) target = $region20
        $region19: #{tpu_custom_call.1} parent=11 // pred_region
          _
        $region20: #{tpu_custom_call.1} parent=11 // pred_fallthru
          _
        // Predicated region
        $region21: #{tpu_custom_call.1} parent=11 // pred_check
          %p256 = pneg %p127
        $region22: #{tpu_custom_call.1} parent=11 // pred_check_branch
          %258 = sbr.rel (%p256) target = $region24
        $region23: #{tpu_custom_call.1} parent=11 // pred_region
          %260 = vsyncadd [#allocation8], 0
          %s261 = smul.addr %s31, 4
          %s262 = scalar_lea.hbm %s3, %s261
          %s263 = sshll.u32 %s262, 4
          %s264 = int_to_ptr.hbm [resolvable:$true] %s263
          %s265 = sshll.u32 [#allocation9], 4
          %s266 = int_to_ptr.vmem [resolvable:$true] %s265
          %271 = dma.hbm_to_vmem [thread:$0]  %s264, 1024, %s266, [#allocation8], 64, 64, 4
        $region24: #{tpu_custom_call.1} parent=11 // pred_fallthru
          _
        // Predicated region
        $region25: #{tpu_custom_call.1} parent=11 // pred_check
          %p272 = pneg %p153
        $region26: #{tpu_custom_call.1} parent=11 // pred_check_branch
          %274 = sbr.rel (%p272) target = $region28
        $region27: #{tpu_custom_call.1} parent=11 // pred_region
          %p275 = scmp.lt.s32.totalorder %s31, 0
          %s276 = scalar_select %p275, %s31, 0
          %s277 = scalar_lea.vmem %s4, %s276
        $region28: #{tpu_custom_call.1} parent=11 // pred_fallthru
          _
        // Predicated region
        $region29: #{tpu_custom_call.1} parent=11 // pred_check
          %p278 = pneg %p179
        $region30: #{tpu_custom_call.1} parent=11 // pred_check_branch
          %280 = sbr.rel (%p278) target = $region32
        $region31: #{tpu_custom_call.1} parent=11 // pred_region
          %s281 = smul.u32 16, %s31
          %283 = vsyncadd [#allocation11], 0
          %s284 = smul.addr %s281, 4
          %s285 = scalar_lea.hbm %s5, %s284
          %s286 = sshll.u32 %s285, 4
          %s287 = int_to_ptr.hbm [resolvable:$true] %s286
          %s288 = sshll.u32 [#allocation10], 4
          %s289 = int_to_ptr.vmem [resolvable:$true] %s288
          %294 = dma.hbm_to_vmem [thread:$0]  %s287, 1024, %s289, [#allocation11], 64, 64, 4
        $region32: #{tpu_custom_call.1} parent=11 // pred_fallthru
          _
        // Predicated region
        $region33: #{tpu_custom_call.1} parent=11 // pred_check
          %p295 = pneg %p200
        $region34: #{tpu_custom_call.1} parent=11 // pred_check_branch
          %297 = sbr.rel (%p295) target = $region36
        $region35: #{tpu_custom_call.1} parent=11 // pred_region
          _
        $region36: #{tpu_custom_call.1} parent=11 // pred_fallthru
          _
      $region12: #{tpu_custom_call.1} parent=5 // pred_fallthru
        _
      %p298 = scmp.lt.s32.totalorder %s21, 2
      // Predicated region
      $region37: #{tpu_custom_call.1} parent=5 // pred_check
        %p299 = pneg %p298
      $region38: #{tpu_custom_call.1} parent=5 // pred_check_branch
        %301 = sbr.rel (%p299) target = $region40
      $region39: #{tpu_custom_call.1} parent=5 // pred_region
        // Predicated region
        $region41: #{tpu_custom_call.1} parent=39 // pred_check
          %p302 = pneg %p53
        $region42: #{tpu_custom_call.1} parent=39 // pred_check_branch
          %304 = sbr.rel (%p302) target = $region44
        $region43: #{tpu_custom_call.1} parent=39 // pred_region
          %s305 = sand.u32 %s43, 1
          %s306 = scalar_lea.sflag [#allocation5], %s305
          %s307 = sand.u32 %s43, 1
          %s308 = smul.addr %s307, 8
          %s309 = scalar_lea.vmem [#allocation4], %s308
          %311 = vsyncadd %s306, 0
          %s312 = smul.addr %s28, 8
          %s313 = scalar_lea.hbm %s0, %s312
          %s315 = sshll.u32 %s313, 4
          %s316 = int_to_ptr.hbm [resolvable:$true] %s315
          %s317 = sshll.u32 %s309, 4
          %s318 = int_to_ptr.vmem [resolvable:$true] %s317
          %320 = dma.hbm_to_vmem [thread:$0]  %s316, 128, %s318, %s306
        $region44: #{tpu_custom_call.1} parent=39 // pred_fallthru
          _
      $region40: #{tpu_custom_call.1} parent=5 // pred_fallthru
        _
      %p321 = scmp.le.s32.totalorder 1, %s21
      %p322 = scmp.lt.s32.totalorder %s21, 3
      %p323 = pnand %p321, %p322
      %p324 = pneg %p323
      // Predicated region
      $region45: #{tpu_custom_call.1} parent=5 // pred_check
        _
      $region46: #{tpu_custom_call.1} parent=5 // pred_check_branch
        %326 = sbr.rel (%p323) target = $region48
      $region47: #{tpu_custom_call.1} parent=5 // pred_region
        %s327 = ssub.s32 %s21, 1
        %s328 = sand.u32 %s46, 1
        %s329 = scalar_lea.sflag [#allocation5], %s328
        %s330 = sand.u32 %s46, 1
        %s331 = smul.addr %s330, 8
        %s332 = scalar_lea.vmem [#allocation4], %s331
        // Predicated region
        $region49: #{tpu_custom_call.1} parent=47 // pred_check
          %p333 = pneg %p59
        $region50: #{tpu_custom_call.1} parent=47 // pred_check_branch
          %335 = sbr.rel (%p333) target = $region52
        $region51: #{tpu_custom_call.1} parent=47 // pred_region
          %337 = dma.done %s329, 128
        $region52: #{tpu_custom_call.1} parent=47 // pred_fallthru
          _
        // Predicated region
        $region53: #{tpu_custom_call.1} parent=47 // pred_check
          %p338 = pneg %p80
        $region54: #{tpu_custom_call.1} parent=47 // pred_check_branch
          %340 = sbr.rel (%p338) target = $region56
        $region55: #{tpu_custom_call.1} parent=47 // pred_region
          %342 = dma.done [#allocation8], 16
        $region56: #{tpu_custom_call.1} parent=47 // pred_fallthru
          _
        // Predicated region
        $region57: #{tpu_custom_call.1} parent=47 // pred_check
          %p343 = pneg %p127
        $region58: #{tpu_custom_call.1} parent=47 // pred_check_branch
          %345 = sbr.rel (%p343) target = $region60
        $region59: #{tpu_custom_call.1} parent=47 // pred_region
          %347 = dma.done [#allocation8], 1024
        $region60: #{tpu_custom_call.1} parent=47 // pred_fallthru
          _
        // Predicated region
        $region61: #{tpu_custom_call.1} parent=47 // pred_check
          %p348 = pneg %p179
        $region62: #{tpu_custom_call.1} parent=47 // pred_check_branch
          %350 = sbr.rel (%p348) target = $region64
        $region63: #{tpu_custom_call.1} parent=47 // pred_region
          %352 = dma.done [#allocation11], 1024
        $region64: #{tpu_custom_call.1} parent=47 // pred_fallthru
          _
        %s353 = sand.u32 %s46, 1
        %s354 = scalar_lea.sflag [#allocation5], %s353
        %s355 = sand.u32 %s46, 1
        %s356 = smul.addr %s355, 8
        %s357 = scalar_lea.vmem [#allocation4], %s356
        %p358 = pneg %p59
        %p359 = pneg %p56
        %p360 = pneg %p80
        %p361 = pneg %p77
        %p362 = pneg %p101
        %p363 = pneg %p98
        %p364 = pneg %p127
        %p365 = pneg %p124
        %p366 = scmp.lt.s32.totalorder %s31, 0
        %s367 = scalar_select %p366, %s31, 0
        %s368 = scalar_lea.vmem %s4, %s367
        %p369 = pneg %p153
        %p370 = pneg %p150
        %p371 = pneg %p179
        %p372 = pneg %p176
        %p373 = pneg %p200
        %p374 = pneg %p197
        %p375 = pneg %p226
        %p376 = pneg %p223
        %s377 = sand.u32 %s213, 1
        %s378 = scalar_lea.sflag [#allocation6], %s377
        %s379 = sand.u32 %s213, 1
        %s380 = smul.addr %s379, 8
        %s381 = scalar_lea.vmem [#allocation12], %s380
        %p382 = scmp.lt.s32.totalorder %s31, 0
        %s383 = scalar_select %p382, %s31, 0
        %s384 = scalar_lea.vmem %s4, %s383
        %s385 = smul.u32 16, %s31
        %p386 = scmp.eq.s32.totalorder %s31, 0
        // Predicated region
        $region65: #{tpu_custom_call.1} parent=47 // pred_check
          %p387 = pneg %p386
        $region66: #{tpu_custom_call.1} parent=47 // pred_check_branch
          %389 = sbr.rel (%p387) target = $region68
        $region67: #{tpu_custom_call.1} parent=47 // pred_region
          %v390 = vld [vmem:[%s332] sm:$0xff]
          %391 = vadd.xlane.f32.xlu0 %v390
          %v392 = vpop.xlane.xlu0 %391
          %v393 = vmul.f32 %v392, 0.03125
          %v394 = vsub.f32 %v390, %v393
          %v395 = vlaneseq
          %v396 = vand.u32 %v395, 127
          %vm397 = vcmp.lt.s32.totalorder %v396, 32
          %v398 = vsel %vm397, 1, 0
          %vm399 = vcmp.eq.s32.totalorder %v398, 1
          %v400 = vsel %vm399, %v394, 0.0
          %v401 = vmul.f32 %v400, %v400
          %402 = vadd.xlane.f32.xlu0 %v401
          %v403 = vpop.xlane.xlu0 %402
          %v404 = vmul.f32 %v403, 0.03125
          %v405 = vadd.f32 %v404, 1e-06
          %v406 = vrsqrt.pop %v405
          %v407 = vmul.f32 %v406, %v405
          %v408 = vmul.f32 %v407, %v406
          %v409 = vmul.f32 0.5, %v408
          %v410 = vsub.f32 1.5, %v409
          %v411 = vmul.f32 %v406, %v410
          %vm412 = vweird.f32 %v405
          %vm413 = vweird.f32 %v406
          %vm414 = vmor %vm412, %vm413
          %v415 = vsel %vm414, %v406, %v411
          %v416 = vmul.f32 %v394, %v415
          %v417 = vld [vmem:[#allocation7] sm:$0x1]
          %v419 = vperm.slane %v417, 0
          %v421 = vmul.f32 %v416, %v419
          %v422 = vld [vmem:[%s2] sm:$0x1]
          %v424 = vperm.slane %v422, 0
          %v426 = vadd.f32 %v421, %v424
          %v427 = vpack.c.bf16 %v426, %v426
          %428 = vst [vmem:[#allocation2] sm:$0xf] %v427
          %429 = vst [vmem:[#allocation3] sm:$0xff] 0.0
        $region68: #{tpu_custom_call.1} parent=47 // pred_fallthru
          _
        %v430 = vld [vmem:[#allocation2] sm:$0xf]
        %v431 = vld [vmem:[#allocation9] sm:$0xf]
        %v432 = vld [vmem:[#allocation9 + $0x4] sm:$0xf]
        %v433 = vld [vmem:[#allocation9 + $0x8] sm:$0xf]
        %v434 = vld [vmem:[#allocation9 + $0xc] sm:$0xf]
        %v435 = vld [vmem:[#allocation9 + $0x10] sm:$0xf]
        %v436 = vld [vmem:[#allocation9 + $0x14] sm:$0xf]
        %v437 = vld [vmem:[#allocation9 + $0x18] sm:$0xf]
        %v438 = vld [vmem:[#allocation9 + $0x1c] sm:$0xf]
        %v439 = vld [vmem:[#allocation9 + $0x20] sm:$0xf]
        %v440 = vld [vmem:[#allocation9 + $0x24] sm:$0xf]
        %v441 = vld [vmem:[#allocation9 + $0x28] sm:$0xf]
        %v442 = vld [vmem:[#allocation9 + $0x2c] sm:$0xf]
        %v443 = vld [vmem:[#allocation9 + $0x30] sm:$0xf]
        %v444 = vld [vmem:[#allocation9 + $0x34] sm:$0xf]
        %v445 = vld [vmem:[#allocation9 + $0x38] sm:$0xf]
        %v446 = vld [vmem:[#allocation9 + $0x3c] sm:$0xf]
        %v447 = vld [vmem:[%s384] sm:$0x1]
        %v449 = vperm.slane %v447, 0
        %v467 = vunpack.c.l.b16 %v431
        %v468 = vunpack.c.l.b16 %v432
        %v469 = vunpack.c.l.b16 %v433
        %v470 = vunpack.c.l.b16 %v434
        %v471 = vunpack.c.l.b16 %v435
        %v472 = vunpack.c.l.b16 %v436
        %v473 = vunpack.c.l.b16 %v437
        %v474 = vunpack.c.l.b16 %v438
        %v475 = vunpack.c.l.b16 %v439
        %v476 = vunpack.c.l.b16 %v440
        %v477 = vunpack.c.l.b16 %v441
        %v478 = vunpack.c.l.b16 %v442
        %v479 = vunpack.c.l.b16 %v443
        %v480 = vunpack.c.l.b16 %v444
        %v481 = vunpack.c.l.b16 %v445
        %v482 = vunpack.c.l.b16 %v446
        %v483 = vpack.c.b16 %v468, %v467
        %v484 = vpack.c.b16 %v470, %v469
        %v485 = vpack.c.b16 %v472, %v471
        %v486 = vpack.c.b16 %v474, %v473
        %v487 = vpack.c.b16 %v476, %v475
        %v488 = vpack.c.b16 %v478, %v477
        %v489 = vpack.c.b16 %v480, %v479
        %v490 = vpack.c.b16 %v482, %v481
        %499 = vmatpush.bf16.msra.mxu0 %v490
        %500 = vmatpush.bf16.msra.mxu0 %v489
        %501 = vmatpush.bf16.msra.mxu0 %v488
        %502 = vmatpush.bf16.msra.mxu0 %v487
        %503 = vmatpush.bf16.msra.mxu0 %v486
        %504 = vmatpush.bf16.msra.mxu0 %v485
        %505 = vmatpush.bf16.msra.mxu0 %v484
        %506 = vmatpush.bf16.msra.mxu0 %v483
        %507 = vmatmul.bf16.gmra.mxu0 %v430
        %v508 = vpop.f32.mrf.mxu0
        %v509 = vadd.f32 %v449, %v508
        %v510 = vpop.f32.mrf.mxu0
        %511 = vdwg.mxu0
        %v512 = vmax.f32 %v509, 0.0
        %v513 = vld [vmem:[#allocation3] sm:$0xff]
        %v514 = vpack.c.bf16 %v512, %v512
        %v515 = vld [vmem:[#allocation10] sm:$0xf]
        %v516 = vld [vmem:[#allocation10 + $0x4] sm:$0xf]
        %v517 = vld [vmem:[#allocation10 + $0x8] sm:$0xf]
        %v518 = vld [vmem:[#allocation10 + $0xc] sm:$0xf]
        %v519 = vld [vmem:[#allocation10 + $0x10] sm:$0xf]
        %v520 = vld [vmem:[#allocation10 + $0x14] sm:$0xf]
        %v521 = vld [vmem:[#allocation10 + $0x18] sm:$0xf]
        %v522 = vld [vmem:[#allocation10 + $0x1c] sm:$0xf]
        %v523 = vld [vmem:[#allocation10 + $0x20] sm:$0xf]
        %v524 = vld [vmem:[#allocation10 + $0x24] sm:$0xf]
        %v525 = vld [vmem:[#allocation10 + $0x28] sm:$0xf]
        %v526 = vld [vmem:[#allocation10 + $0x2c] sm:$0xf]
        %v527 = vld [vmem:[#allocation10 + $0x30] sm:$0xf]
        %v528 = vld [vmem:[#allocation10 + $0x34] sm:$0xf]
        %v529 = vld [vmem:[#allocation10 + $0x38] sm:$0xf]
        %v530 = vld [vmem:[#allocation10 + $0x3c] sm:$0xf]
        %v547 = vunpack.c.l.b16 %v515
        %v548 = vunpack.c.l.b16 %v516
        %v549 = vunpack.c.l.b16 %v517
        %v550 = vunpack.c.l.b16 %v518
        %v551 = vunpack.c.l.b16 %v519
        %v552 = vunpack.c.l.b16 %v520
        %v553 = vunpack.c.l.b16 %v521
        %v554 = vunpack.c.l.b16 %v522
        %v555 = vunpack.c.l.b16 %v523
        %v556 = vunpack.c.l.b16 %v524
        %v557 = vunpack.c.l.b16 %v525
        %v558 = vunpack.c.l.b16 %v526
        %v559 = vunpack.c.l.b16 %v527
        %v560 = vunpack.c.l.b16 %v528
        %v561 = vunpack.c.l.b16 %v529
        %v562 = vunpack.c.l.b16 %v530
        %v563 = vpack.c.b16 %v548, %v547
        %v564 = vpack.c.b16 %v550, %v549
        %v565 = vpack.c.b16 %v552, %v551
        %v566 = vpack.c.b16 %v554, %v553
        %v567 = vpack.c.b16 %v556, %v555
        %v568 = vpack.c.b16 %v558, %v557
        %v569 = vpack.c.b16 %v560, %v559
        %v570 = vpack.c.b16 %v562, %v561
        %579 = vmatpush.bf16.msra.mxu0 %v570
        %580 = vmatpush.bf16.msra.mxu0 %v569
        %581 = vmatpush.bf16.msra.mxu0 %v568
        %582 = vmatpush.bf16.msra.mxu0 %v567
        %583 = vmatpush.bf16.msra.mxu0 %v566
        %584 = vmatpush.bf16.msra.mxu0 %v565
        %585 = vmatpush.bf16.msra.mxu0 %v564
        %586 = vmatpush.bf16.msra.mxu0 %v563
        %587 = vmatmul.bf16.gmra.mxu0 %v514
        %v588 = vpop.f32.mrf.mxu0
        %v589 = vadd.f32 0.0, %v588
        %v590 = vpop.f32.mrf.mxu0
        %591 = vdwg.mxu0
        %v592 = vadd.f32 %v513, %v589
        %593 = vst [vmem:[#allocation3] sm:$0xff] %v592
        // Predicated region
        $region69: #{tpu_custom_call.1} parent=47 // pred_check
          %p594 = pneg %p386
        $region70: #{tpu_custom_call.1} parent=47 // pred_check_branch
          %596 = sbr.rel (%p594) target = $region72
        $region71: #{tpu_custom_call.1} parent=47 // pred_region
          %v597 = vld [vmem:[#allocation3] sm:$0xff]
          %v598 = vld [vmem:[%s6] sm:$0x1]
          %v600 = vperm.slane %v598, 0
          %v602 = vadd.f32 %v597, %v600
          %v603 = vld [vmem:[%s332] sm:$0xff]
          %v604 = vadd.f32 %v602, %v603
          %605 = vst [vmem:[%s381] sm:$0xff] %v604
        $region72: #{tpu_custom_call.1} parent=47 // pred_fallthru
          _
        %s606 = sand.u32 %s213, 1
        %s607 = scalar_lea.sflag [#allocation6], %s606
        %s608 = sand.u32 %s213, 1
        %s609 = smul.addr %s608, 8
        %s610 = scalar_lea.vmem [#allocation12], %s609
        // Predicated region
        $region73: #{tpu_custom_call.1} parent=47 // pred_check
          %p611 = pneg %p223
        $region74: #{tpu_custom_call.1} parent=47 // pred_check_branch
          %613 = sbr.rel (%p611) target = $region76
        $region75: #{tpu_custom_call.1} parent=47 // pred_region
          %615 = vsyncadd %s607, 0
          %s616 = smul.addr %s30, 8
          %s617 = scalar_lea.hbm %s7, %s616
          %s619 = sshll.u32 %s610, 4
          %s620 = int_to_ptr.vmem [resolvable:$true] %s619
          %s621 = sshll.u32 %s617, 4
          %s622 = int_to_ptr.hbm [resolvable:$true] %s621
          %624 = dma.vmem_to_hbm [thread:$0]  %s620, 128, %s622, %s607
        $region76: #{tpu_custom_call.1} parent=47 // pred_fallthru
          _
      $region48: #{tpu_custom_call.1} parent=5 // pred_fallthru
        _
      %p625 = scmp.le.s32.totalorder 2, %s21
      // Predicated region
      $region77: #{tpu_custom_call.1} parent=5 // pred_check
        %p626 = pneg %p625
      $region78: #{tpu_custom_call.1} parent=5 // pred_check_branch
        %628 = sbr.rel (%p626) target = $region80
      $region79: #{tpu_custom_call.1} parent=5 // pred_region
        %s629 = ssub.s32 %s21, 2
        // Predicated region
        $region81: #{tpu_custom_call.1} parent=79 // pred_check
          %p630 = pneg %p229
        $region82: #{tpu_custom_call.1} parent=79 // pred_check_branch
          %632 = sbr.rel (%p630) target = $region84
        $region83: #{tpu_custom_call.1} parent=79 // pred_region
          %s633 = sand.u32 %s214, 1
          %s634 = scalar_lea.sflag [#allocation6], %s633
          %s635 = sand.u32 %s214, 1
          %s636 = smul.addr %s635, 8
          %s637 = scalar_lea.vmem [#allocation12], %s636
          %639 = dma.done %s634, 128
        $region84: #{tpu_custom_call.1} parent=79 // pred_fallthru
          _
      $region80: #{tpu_custom_call.1} parent=5 // pred_fallthru
        _
    $region6: #{tpu_custom_call.1} parent=1 // loop_footer
      %s25 = sadd.s32 1, %s21
    $region7: #{tpu_custom_call.1} parent=1 // loop_footer_branch
      %20 = sbr.rel target = $region3
    $region8: #{tpu_custom_call.1} parent=1 // loop_exit
      _
    %640 = vsyncpa [#allocation5], 1
    %s641 = scalar_lea.sflag [#allocation5], 1
    %642 = vsyncpa %s641, 1
    %643 = vsyncpa [#allocation8], 1
    %644 = vsyncpa [#allocation11], 1
    %645 = vsyncpa [#allocation6], 1
    %s646 = scalar_lea.sflag [#allocation6], 1
    %647 = vsyncpa %s646, 1

// kernel: tpu_custom_call.1
$region0: #{tpu_custom_call.1}
  #allocation0 [shape = 'u32[]', space=smem, size = 0x4, offset = 0x4, fixed_abs, tag = 'smem constant byte address 0x4 - core index']
  #allocation1 [shape = 'u32[72,128]{1,0:T(1,128)}', space=vmem, size = 0x9000, scoped, tag = 'internal scratch']
  #allocation2 [shape = 'bf16[8,128]{1,0:T(8,128)(2,1)}', space=vmem, size = 0x800, scoped, tag = 'scratch operand']
  #allocation3 [shape = 'f32[8,128]{1,0:T(8,128)}', space=vmem, size = 0x1000, scoped, tag = 'scratch operand']
  %s0 = inlined_call_operand.hbm [shape: f32[16,128], index: 0, kind: input, shape index: {}]
  %s1 = inlined_call_operand.hbm [shape: f32[1,128], index: 1, kind: input, shape index: {}]
  %s2 = inlined_call_operand.vmem [shape: f32[1,128], index: 2, kind: input, shape index: {}]
  %s3 = inlined_call_operand.hbm [shape: bf16[128,128], index: 3, kind: input, shape index: {}]
  %s4 = inlined_call_operand.vmem [shape: f32[1,128], index: 4, kind: input, shape index: {}]
  %s5 = inlined_call_operand.hbm [shape: bf16[128,128], index: 5, kind: input, shape index: {}]
  %s6 = inlined_call_operand.vmem [shape: f32[1,128], index: 6, kind: input, shape index: {}]
  %s7 = inlined_call_operand.hbm [shape: f32[16,128], index: 7, kind: output, shape index: {}]
  %s8 = sld [smem:[#allocation0]]
  $region85: #{tpu_custom_call.1} parent=0
    _
  %s10 = ssub.s32 1, %s8
  %s11 = scalar_select 0, %s10, %s8
  $region1: #{tpu_custom_call.1} parent=0
    #allocation4 [shape = 'u8[8192]{0}', space=vmem, size = 0x2000, scoped, tag = 'input window, operand 0']
    #allocation5 [shape = 's32[2]{0}', space=sflag, size = 0x8, scoped, tag = 'scoped memory for tpu_custom_call.1']
    #allocation6 [shape = 's32[2]{0}', space=sflag, size = 0x8, scoped, tag = 'scoped memory for tpu_custom_call.1']
    #allocation7 [shape = 'u8[512]{0}', space=vmem, size = 0x400, scoped, tag = 'input window, operand 1, single buffered']
    #allocation8 [shape = 's32[1]{0}', space=sflag, size = 0x4, scoped, tag = 'scoped memory for tpu_custom_call.1']
    #allocation9 [shape = 'u8[32768]{0}', space=vmem, size = 0x8000, scoped, tag = 'input window, operand 3, single buffered']
    #allocation10 [shape = 'u8[32768]{0}', space=vmem, size = 0x8000, scoped, tag = 'input window, operand 5, single buffered']
    #allocation11 [shape = 's32[1]{0}', space=sflag, size = 0x4, scoped, tag = 'scoped memory for tpu_custom_call.1']
    #allocation12 [shape = 'u8[8192]{0}', space=vmem, size = 0x2000, scoped, tag = 'output window, operand 0']
    %12 = vsyncpa [#allocation5], 0
    %s13 = scalar_lea.sflag [#allocation5], 1
    %14 = vsyncpa %s13, 0
    %15 = vsyncpa [#allocation8], 0
    %16 = vsyncpa [#allocation11], 0
    %17 = vsyncpa [#allocation6], 0
    %s18 = scalar_lea.sflag [#allocation6], 1
    %19 = vsyncpa %s18, 0
    loop: start=0, step=1, limit=4
    $region2: #{tpu_custom_call.1} parent=1 // loop_pre_header
      _
    $region3: #{tpu_custom_call.1} parent=1 // loop_header
      %s21 = sphi 0, %s25
      %p22 = scmp.ge.s32.totalorder %s21, 4
      %s28 = sphi 0, %s40
      %s29 = sphi 0, %s36
      %s30 = sphi 0, %s28
      %s31 = sphi 0, %s29
      %s32 = sphi 0, %s30
      %s33 = sphi 0, %s31
      %s43 = sphi 0, %s45
      %s46 = sphi 0, %s43
      %s47 = sphi 0, %s46
      %s63 = sphi 0, %s47
      %s67 = sphi 0, %s67
      %s69 = sphi 0, %s67
      %s70 = sphi 0, %s69
      %s84 = sphi 0, %s70
      %s88 = sphi 0, %s88
      %s90 = sphi 0, %s88
      %s91 = sphi 0, %s90
      %s105 = sphi 0, %s91
      %s111 = sphi 0, %s113
      %s114 = sphi 0, %s111
      %s115 = sphi 0, %s114
      %s131 = sphi 0, %s115
      %s137 = sphi 0, %s139
      %s140 = sphi 0, %s137
      %s141 = sphi 0, %s140
      %s157 = sphi 0, %s141
      %s163 = sphi 0, %s165
      %s166 = sphi 0, %s163
      %s167 = sphi 0, %s166
      %s183 = sphi 0, %s167
      %s187 = sphi 0, %s187
      %s189 = sphi 0, %s187
      %s190 = sphi 0, %s189
      %s204 = sphi 0, %s190
      %s210 = sphi 0, %s212
      %s213 = sphi 0, %s210
      %s214 = sphi 0, %s213
      %s230 = sphi 0, %s214
    $region4: #{tpu_custom_call.1} parent=1 // loop_header_branch
      %24 = sbr.rel (%p22) target = $region8
    $region5: #{tpu_custom_call.1} parent=1 // loop_body
      %s26 = ssub.s32 %s21, 1
      %s27 = ssub.s32 %s21, 2
      %s34 = sadd.s32 1, %s29
      %p35 = scmp.ge.s32.totalorder %s34, 1
      %s36 = scalar_select %p35, 0, %s34
      %s37 = sadd.s32 1, %s28
      %s38 = scalar_select %p35, %s37, %s28
      %p39 = scmp.ge.s32.totalorder %s38, 2
      %s40 = scalar_select %p39, 0, %s38
      %s41 = ssub.s32 %s28, %s40
      %p42 = scmp.eq.s32.totalorder %s41, 0
      %s44 = sadd.s32 %s43, 1
      %s45 = scalar_select %p42, %s43, %s44
      %p48 = pneg %p42
      %p49 = scmp.eq.s32.totalorder %s21, 1
      %p50 = por %p48, %p49
      %p51 = scmp.ne.s32.totalorder %s43, %s46
      %p52 = scmp.eq.s32.totalorder %s21, 0
      %p53 = por %p51, %p52
      %p54 = scmp.ne.s32.totalorder %s43, %s46
      %p55 = scmp.eq.s32.totalorder %s26, 1
      %p56 = por %p54, %p55
      %p57 = scmp.ne.s32.totalorder %s46, %s47
      %p58 = scmp.eq.s32.totalorder %s26, 0
      %p59 = por %p57, %p58
      %p60 = scmp.ne.s32.totalorder %s46, %s47
      %p61 = scmp.eq.s32.totalorder %s27, 1
      %p62 = por %p60, %p61
      %p64 = scmp.ne.s32.totalorder %s47, %s63
      %p65 = scmp.eq.s32.totalorder %s27, 0
      %p66 = por %p64, %p65
      %s68 = sadd.s32 %s67, 1
      %p71 = scmp.eq.s32.totalorder %s21, 1
      %p72 = scmp.ne.s32.totalorder %s67, %s69
      %p73 = scmp.eq.s32.totalorder %s21, 0
      %p74 = por %p72, %p73
      %p75 = scmp.ne.s32.totalorder %s67, %s69
      %p76 = scmp.eq.s32.totalorder %s26, 1
      %p77 = por %p75, %p76
      %p78 = scmp.ne.s32.totalorder %s69, %s70
      %p79 = scmp.eq.s32.totalorder %s26, 0
      %p80 = por %p78, %p79
      %p81 = scmp.ne.s32.totalorder %s69, %s70
      %p82 = scmp.eq.s32.totalorder %s27, 1
      %p83 = por %p81, %p82
      %p85 = scmp.ne.s32.totalorder %s70, %s84
      %p86 = scmp.eq.s32.totalorder %s27, 0
      %p87 = por %p85, %p86
      %s89 = sadd.s32 %s88, 1
      %p92 = scmp.eq.s32.totalorder %s21, 1
      %p93 = scmp.ne.s32.totalorder %s88, %s90
      %p94 = scmp.eq.s32.totalorder %s21, 0
      %p95 = por %p93, %p94
      %p96 = scmp.ne.s32.totalorder %s88, %s90
      %p97 = scmp.eq.s32.totalorder %s26, 1
      %p98 = por %p96, %p97
      %p99 = scmp.ne.s32.totalorder %s90, %s91
      %p100 = scmp.eq.s32.totalorder %s26, 0
      %p101 = por %p99, %p100
      %p102 = scmp.ne.s32.totalorder %s90, %s91
      %p103 = scmp.eq.s32.totalorder %s27, 1
      %p104 = por %p102, %p103
      %p106 = scmp.ne.s32.totalorder %s91, %s105
      %p107 = scmp.eq.s32.totalorder %s27, 0
      %p108 = por %p106, %p107
      %s109 = ssub.s32 %s29, %s36
      %p110 = scmp.eq.s32.totalorder %s109, 0
      %s112 = sadd.s32 %s111, 1
      %s113 = scalar_select %p110, %s111, %s112
      %p116 = pneg %p110
      %p117 = scmp.eq.s32.totalorder %s21, 1
      %p118 = por %p116, %p117
      %p119 = scmp.ne.s32.totalorder %s111, %s114
      %p120 = scmp.eq.s32.totalorder %s21, 0
      %p121 = por %p119, %p120
      %p122 = scmp.ne.s32.totalorder %s111, %s114
      %p123 = scmp.eq.s32.totalorder %s26, 1
      %p124 = por %p122, %p123
      %p125 = scmp.ne.s32.totalorder %s114, %s115
      %p126 = scmp.eq.s32.totalorder %s26, 0
      %p127 = por %p125, %p126
      %p128 = scmp.ne.s32.totalorder %s114, %s115
      %p129 = scmp.eq.s32.totalorder %s27, 1
      %p130 = por %p128, %p129
      %p132 = scmp.ne.s32.totalorder %s115, %s131
      %p133 = scmp.eq.s32.totalorder %s27, 0
      %p134 = por %p132, %p133
      %s135 = ssub.s32 %s29, %s36
      %p136 = scmp.eq.s32.totalorder %s135, 0
      %s138 = sadd.s32 %s137, 1
      %s139 = scalar_select %p136, %s137, %s138
      %p142 = pneg %p136
      %p143 = scmp.eq.s32.totalorder %s21, 1
      %p144 = por %p142, %p143
      %p145 = scmp.ne.s32.totalorder %s137, %s140
      %p146 = scmp.eq.s32.totalorder %s21, 0
      %p147 = por %p145, %p146
      %p148 = scmp.ne.s32.totalorder %s137, %s140
      %p149 = scmp.eq.s32.totalorder %s26, 1
      %p150 = por %p148, %p149
      %p151 = scmp.ne.s32.totalorder %s140, %s141
      %p152 = scmp.eq.s32.totalorder %s26, 0
      %p153 = por %p151, %p152
      %p154 = scmp.ne.s32.totalorder %s140, %s141
      %p155 = scmp.eq.s32.totalorder %s27, 1
      %p156 = por %p154, %p155
      %p158 = scmp.ne.s32.totalorder %s141, %s157
      %p159 = scmp.eq.s32.totalorder %s27, 0
      %p160 = por %p158, %p159
      %s161 = ssub.s32 %s29, %s36
      %p162 = scmp.eq.s32.totalorder %s161, 0
      %s164 = sadd.s32 %s163, 1
      %s165 = scalar_select %p162, %s163, %s164
      %p168 = pneg %p162
      %p169 = scmp.eq.s32.totalorder %s21, 1
      %p170 = por %p168, %p169
      %p171 = scmp.ne.s32.totalorder %s163, %s166
      %p172 = scmp.eq.s32.totalorder %s21, 0
      %p173 = por %p171, %p172
      %p174 = scmp.ne.s32.totalorder %s163, %s166
      %p175 = scmp.eq.s32.totalorder %s26, 1
      %p176 = por %p174, %p175
      %p177 = scmp.ne.s32.totalorder %s166, %s167
      %p178 = scmp.eq.s32.totalorder %s26, 0
      %p179 = por %p177, %p178
      %p180 = scmp.ne.s32.totalorder %s166, %s167
      %p181 = scmp.eq.s32.totalorder %s27, 1
      %p182 = por %p180, %p181
      %p184 = scmp.ne.s32.totalorder %s167, %s183
      %p185 = scmp.eq.s32.totalorder %s27, 0
      %p186 = por %p184, %p185
      %s188 = sadd.s32 %s187, 1
      %p191 = scmp.eq.s32.totalorder %s21, 1
      %p192 = scmp.ne.s32.totalorder %s187, %s189
      %p193 = scmp.eq.s32.totalorder %s21, 0
      %p194 = por %p192, %p193
      %p195 = scmp.ne.s32.totalorder %s187, %s189
      %p196 = scmp.eq.s32.totalorder %s26, 1
      %p197 = por %p195, %p196
      %p198 = scmp.ne.s32.totalorder %s189, %s190
      %p199 = scmp.eq.s32.totalorder %s26, 0
      %p200 = por %p198, %p199
      %p201 = scmp.ne.s32.totalorder %s189, %s190
      %p202 = scmp.eq.s32.totalorder %s27, 1
      %p203 = por %p201, %p202
      %p205 = scmp.ne.s32.totalorder %s190, %s204
      %p206 = scmp.eq.s32.totalorder %s27, 0
      %p207 = por %p205, %p206
      %s208 = ssub.s32 %s28, %s40
      %p209 = scmp.eq.s32.totalorder %s208, 0
      %s211 = sadd.s32 %s210, 1
      %s212 = scalar_select %p209, %s210, %s211
      %p215 = pneg %p209
      %p216 = scmp.eq.s32.totalorder %s21, 1
      %p217 = por %p215, %p216
      %p218 = scmp.ne.s32.totalorder %s210, %s213
      %p219 = scmp.eq.s32.totalorder %s21, 0
      %p220 = por %p218, %p219
      %p221 = scmp.ne.s32.totalorder %s210, %s213
      %p222 = scmp.eq.s32.totalorder %s26, 1
      %p223 = por %p221, %p222
      %p224 = scmp.ne.s32.totalorder %s213, %s214
      %p225 = scmp.eq.s32.totalorder %s26, 0
      %p226 = por %p224, %p225
      %p227 = scmp.ne.s32.totalorder %s213, %s214
      %p228 = scmp.eq.s32.totalorder %s27, 1
      %p229 = por %p227, %p228
      %p231 = scmp.ne.s32.totalorder %s214, %s230
      %p232 = scmp.eq.s32.totalorder %s27, 0
      %p233 = por %p231, %p232
      %p234 = scmp.le.s32.totalorder 1, %s21
      %p235 = scmp.lt.s32.totalorder %s21, 3
      %p236 = pnand %p234, %p235
      %p237 = pneg %p236
      // Predicated region
      $region9: #{tpu_custom_call.1} parent=5 // pred_check
        _
      $region10: #{tpu_custom_call.1} parent=5 // pred_check_branch
        %239 = sbr.rel (%p236) target = $region12
      $region11: #{tpu_custom_call.1} parent=5 // pred_region
        %s240 = ssub.s32 %s21, 1
        // Predicated region
        $region13: #{tpu_custom_call.1} parent=11 // pred_check
          %p241 = pneg %p80
        $region14: #{tpu_custom_call.1} parent=11 // pred_check_branch
          %243 = sbr.rel (%p241) target = $region16
        $region15: #{tpu_custom_call.1} parent=11 // pred_region
          %245 = vsyncadd [#allocation8], 0
          %s247 = sshll.u32 %s1, 4
          %s248 = int_to_ptr.hbm [resolvable:$true] %s247
          %s249 = sshll.u32 [#allocation7], 4
          %s250 = int_to_ptr.vmem [resolvable:$true] %s249
          %252 = dma.hbm_to_vmem [thread:$0]  %s248, 16, %s250, [#allocation8]
        $region16: #{tpu_custom_call.1} parent=11 // pred_fallthru
          _
        // Predicated region
        $region17: #{tpu_custom_call.1} parent=11 // pred_check
          %p253 = pneg %p101
        $region18: #{tpu_custom_call.1} parent=11 // pred_check_branch
          %255 = sbr.rel (%p253) target = $region20
        $region19: #{tpu_custom_call.1} parent=11 // pred_region
          _
        $region20: #{tpu_custom_call.1} parent=11 // pred_fallthru
          _
        // Predicated region
        $region21: #{tpu_custom_call.1} parent=11 // pred_check
          %p256 = pneg %p127
        $region22: #{tpu_custom_call.1} parent=11 // pred_check_branch
          %258 = sbr.rel (%p256) target = $region24
        $region23: #{tpu_custom_call.1} parent=11 // pred_region
          %260 = vsyncadd [#allocation8], 0
          %s261 = smul.addr %s31, 4
          %s262 = scalar_lea.hbm %s3, %s261
          %s263 = sshll.u32 %s262, 4
          %s264 = int_to_ptr.hbm [resolvable:$true] %s263
          %s265 = sshll.u32 [#allocation9], 4
          %s266 = int_to_ptr.vmem [resolvable:$true] %s265
          %271 = dma.hbm_to_vmem [thread:$0]  %s264, 1024, %s266, [#allocation8], 64, 64, 4
        $region24: #{tpu_custom_call.1} parent=11 // pred_fallthru
          _
        // Predicated region
        $region25: #{tpu_custom_call.1} parent=11 // pred_check
          %p272 = pneg %p153
        $region26: #{tpu_custom_call.1} parent=11 // pred_check_branch
          %274 = sbr.rel (%p272) target = $region28
        $region27: #{tpu_custom_call.1} parent=11 // pred_region
          %p275 = scmp.lt.s32.totalorder %s31, 0
          %s276 = scalar_select %p275, %s31, 0
          %s277 = scalar_lea.vmem %s4, %s276
        $region28: #{tpu_custom_call.1} parent=11 // pred_fallthru
          _
        // Predicated region
        $region29: #{tpu_custom_call.1} parent=11 // pred_check
          %p278 = pneg %p179
        $region30: #{tpu_custom_call.1} parent=11 // pred_check_branch
          %280 = sbr.rel (%p278) target = $region32
        $region31: #{tpu_custom_call.1} parent=11 // pred_region
          %s281 = smul.u32 16, %s31
          %283 = vsyncadd [#allocation11], 0
          %s284 = smul.addr %s281, 4
          %s285 = scalar_lea.hbm %s5, %s284
          %s286 = sshll.u32 %s285, 4
          %s287 = int_to_ptr.hbm [resolvable:$true] %s286
          %s288 = sshll.u32 [#allocation10], 4
          %s289 = int_to_ptr.vmem [resolvable:$true] %s288
          %294 = dma.hbm_to_vmem [thread:$0]  %s287, 1024, %s289, [#allocation11], 64, 64, 4
        $region32: #{tpu_custom_call.1} parent=11 // pred_fallthru
          _
        // Predicated region
        $region33: #{tpu_custom_call.1} parent=11 // pred_check
          %p295 = pneg %p200
        $region34: #{tpu_custom_call.1} parent=11 // pred_check_branch
          %297 = sbr.rel (%p295) target = $region36
        $region35: #{tpu_custom_call.1} parent=11 // pred_region
          _
        $region36: #{tpu_custom_call.1} parent=11 // pred_fallthru
          _
      $region12: #{tpu_custom_call.1} parent=5 // pred_fallthru
        _
      %p298 = scmp.lt.s32.totalorder %s21, 2
      // Predicated region
      $region37: #{tpu_custom_call.1} parent=5 // pred_check
        %p299 = pneg %p298
      $region38: #{tpu_custom_call.1} parent=5 // pred_check_branch
        %301 = sbr.rel (%p299) target = $region40
      $region39: #{tpu_custom_call.1} parent=5 // pred_region
        // Predicated region
        $region41: #{tpu_custom_call.1} parent=39 // pred_check
          %p302 = pneg %p53
        $region42: #{tpu_custom_call.1} parent=39 // pred_check_branch
          %304 = sbr.rel (%p302) target = $region44
        $region43: #{tpu_custom_call.1} parent=39 // pred_region
          %s305 = sand.u32 %s43, 1
          %s306 = scalar_lea.sflag [#allocation5], %s305
          %s307 = sand.u32 %s43, 1
          %s308 = smul.addr %s307, 8
          %s309 = scalar_lea.vmem [#allocation4], %s308
          %311 = vsyncadd %s306, 0
          %s312 = smul.addr %s28, 8
          %s313 = scalar_lea.hbm %s0, %s312
          %s315 = sshll.u32 %s313, 4
          %s316 = int_to_ptr.hbm [resolvable:$true] %s315
          %s317 = sshll.u32 %s309, 4
          %s318 = int_to_ptr.vmem [resolvable:$true] %s317
          %320 = dma.hbm_to_vmem [thread:$0]  %s316, 128, %s318, %s306
        $region44: #{tpu_custom_call.1} parent=39 // pred_fallthru
          _
      $region40: #{tpu_custom_call.1} parent=5 // pred_fallthru
        _
      %p321 = scmp.le.s32.totalorder 1, %s21
      %p322 = scmp.lt.s32.totalorder %s21, 3
      %p323 = pnand %p321, %p322
      %p324 = pneg %p323
      // Predicated region
      $region45: #{tpu_custom_call.1} parent=5 // pred_check
        _
      $region46: #{tpu_custom_call.1} parent=5 // pred_check_branch
        %326 = sbr.rel (%p323) target = $region48
      $region47: #{tpu_custom_call.1} parent=5 // pred_region
        %s327 = ssub.s32 %s21, 1
        %s328 = sand.u32 %s46, 1
        %s329 = scalar_lea.sflag [#allocation5], %s328
        %s330 = sand.u32 %s46, 1
        %s331 = smul.addr %s330, 8
        %s332 = scalar_lea.vmem [#allocation4], %s331
        // Predicated region
        $region49: #{tpu_custom_call.1} parent=47 // pred_check
          %p333 = pneg %p59
        $region50: #{tpu_custom_call.1} parent=47 // pred_check_branch
          %335 = sbr.rel (%p333) target = $region52
        $region51: #{tpu_custom_call.1} parent=47 // pred_region
          %337 = dma.done %s329, 128
        $region52: #{tpu_custom_call.1} parent=47 // pred_fallthru
          _
        // Predicated region
        $region53: #{tpu_custom_call.1} parent=47 // pred_check
          %p338 = pneg %p80
        $region54: #{tpu_custom_call.1} parent=47 // pred_check_branch
          %340 = sbr.rel (%p338) target = $region56
        $region55: #{tpu_custom_call.1} parent=47 // pred_region
          %342 = dma.done [#allocation8], 16
        $region56: #{tpu_custom_call.1} parent=47 // pred_fallthru
          _
        // Predicated region
        $region57: #{tpu_custom_call.1} parent=47 // pred_check
          %p343 = pneg %p127
        $region58: #{tpu_custom_call.1} parent=47 // pred_check_branch
          %345 = sbr.rel (%p343) target = $region60
        $region59: #{tpu_custom_call.1} parent=47 // pred_region
          %347 = dma.done [#allocation8], 1024
        $region60: #{tpu_custom_call.1} parent=47 // pred_fallthru
          _
        // Predicated region
        $region61: #{tpu_custom_call.1} parent=47 // pred_check
          %p348 = pneg %p179
        $region62: #{tpu_custom_call.1} parent=47 // pred_check_branch
          %350 = sbr.rel (%p348) target = $region64
        $region63: #{tpu_custom_call.1} parent=47 // pred_region
          %352 = dma.done [#allocation11], 1024
        $region64: #{tpu_custom_call.1} parent=47 // pred_fallthru
          _
        %s353 = sand.u32 %s46, 1
        %s354 = scalar_lea.sflag [#allocation5], %s353
        %s355 = sand.u32 %s46, 1
        %s356 = smul.addr %s355, 8
        %s357 = scalar_lea.vmem [#allocation4], %s356
        %p358 = pneg %p59
        %p359 = pneg %p56
        %p360 = pneg %p80
        %p361 = pneg %p77
        %p362 = pneg %p101
        %p363 = pneg %p98
        %p364 = pneg %p127
        %p365 = pneg %p124
        %p366 = scmp.lt.s32.totalorder %s31, 0
        %s367 = scalar_select %p366, %s31, 0
        %s368 = scalar_lea.vmem %s4, %s367
        %p369 = pneg %p153
        %p370 = pneg %p150
        %p371 = pneg %p179
        %p372 = pneg %p176
        %p373 = pneg %p200
        %p374 = pneg %p197
        %p375 = pneg %p226
        %p376 = pneg %p223
        %s377 = sand.u32 %s213, 1
        %s378 = scalar_lea.sflag [#allocation6], %s377
        %s379 = sand.u32 %s213, 1
        %s380 = smul.addr %s379, 8
        %s381 = scalar_lea.vmem [#allocation12], %s380
        %p382 = scmp.lt.s32.totalorder %s31, 0
        %s383 = scalar_select %p382, %s31, 0
        %s384 = scalar_lea.vmem %s4, %s383
        %s385 = smul.u32 16, %s31
        %p386 = scmp.eq.s32.totalorder %s31, 0
        // Predicated region
        $region65: #{tpu_custom_call.1} parent=47 // pred_check
          %p387 = pneg %p386
        $region66: #{tpu_custom_call.1} parent=47 // pred_check_branch
          %389 = sbr.rel (%p387) target = $region68
        $region67: #{tpu_custom_call.1} parent=47 // pred_region
          %v390 = vld [vmem:[%s332] sm:$0xff]
          %391 = vadd.xlane.f32.xlu0 %v390
          %v392 = vpop.xlane.xlu0 %391
          %v393 = vmul.f32 %v392, 0.03125
          %v394 = vsub.f32 %v390, %v393
          %v395 = vlaneseq
          %v396 = vand.u32 %v395, 127
          %vm397 = vcmp.lt.s32.totalorder %v396, 32
          %v398 = vsel %vm397, 1, 0
          %vm399 = vcmp.eq.s32.totalorder %v398, 1
          %v400 = vsel %vm399, %v394, 0.0
          %v401 = vmul.f32 %v400, %v400
          %402 = vadd.xlane.f32.xlu0 %v401
          %v403 = vpop.xlane.xlu0 %402
          %v404 = vmul.f32 %v403, 0.03125
          %v405 = vadd.f32 %v404, 1e-06
          %v406 = vrsqrt.pop %v405
          %v407 = vmul.f32 %v406, %v405
          %v408 = vmul.f32 %v407, %v406
          %v409 = vmul.f32 0.5, %v408
          %v410 = vsub.f32 1.5, %v409
          %v411 = vmul.f32 %v406, %v410
          %vm412 = vweird.f32 %v405
          %vm413 = vweird.f32 %v406
          %vm414 = vmor %vm412, %vm413
          %v415 = vsel %vm414, %v406, %v411
          %v416 = vmul.f32 %v394, %v415
          %v417 = vld [vmem:[#allocation7] sm:$0x1]
          %v419 = vperm.slane %v417, 0
          %v421 = vmul.f32 %v416, %v419
          %v422 = vld [vmem:[%s2] sm:$0x1]
          %v424 = vperm.slane %v422, 0
          %v426 = vadd.f32 %v421, %v424
          %v427 = vpack.c.bf16 %v426, %v426
          %428 = vst [vmem:[#allocation2] sm:$0xf] %v427
          %429 = vst [vmem:[#allocation3] sm:$0xff] 0.0
        $region68: #{tpu_custom_call.1} parent=47 // pred_fallthru
          _
        %v430 = vld [vmem:[#allocation2] sm:$0xf]
        %v431 = vld [vmem:[#allocation9] sm:$0xf]
        %v432 = vld [vmem:[#allocation9 + $0x4] sm:$0xf]
        %v433 = vld [vmem:[#allocation9 + $0x8] sm:$0xf]
        %v434 = vld [vmem:[#allocation9 + $0xc] sm:$0xf]
        %v435 = vld [vmem:[#allocation9 + $0x10] sm:$0xf]
        %v436 = vld [vmem:[#allocation9 + $0x14] sm:$0xf]
        %v437 = vld [vmem:[#allocation9 + $0x18] sm:$0xf]
        %v438 = vld [vmem:[#allocation9 + $0x1c] sm:$0xf]
        %v439 = vld [vmem:[#allocation9 + $0x20] sm:$0xf]
        %v440 = vld [vmem:[#allocation9 + $0x24] sm:$0xf]
        %v441 = vld [vmem:[#allocation9 + $0x28] sm:$0xf]
        %v442 = vld [vmem:[#allocation9 + $0x2c] sm:$0xf]
        %v443 = vld [vmem:[#allocation9 + $0x30] sm:$0xf]
        %v444 = vld [vmem:[#allocation9 + $0x34] sm:$0xf]
        %v445 = vld [vmem:[#allocation9 + $0x38] sm:$0xf]
        %v446 = vld [vmem:[#allocation9 + $0x3c] sm:$0xf]
        %v447 = vld [vmem:[%s384] sm:$0x1]
        %v449 = vperm.slane %v447, 0
        %v467 = vunpack.c.l.b16 %v431
        %v468 = vunpack.c.l.b16 %v432
        %v469 = vunpack.c.l.b16 %v433
        %v470 = vunpack.c.l.b16 %v434
        %v471 = vunpack.c.l.b16 %v435
        %v472 = vunpack.c.l.b16 %v436
        %v473 = vunpack.c.l.b16 %v437
        %v474 = vunpack.c.l.b16 %v438
        %v475 = vunpack.c.l.b16 %v439
        %v476 = vunpack.c.l.b16 %v440
        %v477 = vunpack.c.l.b16 %v441
        %v478 = vunpack.c.l.b16 %v442
        %v479 = vunpack.c.l.b16 %v443
        %v480 = vunpack.c.l.b16 %v444
        %v481 = vunpack.c.l.b16 %v445
        %v482 = vunpack.c.l.b16 %v446
        %v483 = vpack.c.b16 %v468, %v467
        %v484 = vpack.c.b16 %v470, %v469
        %v485 = vpack.c.b16 %v472, %v471
        %v486 = vpack.c.b16 %v474, %v473
        %v487 = vpack.c.b16 %v476, %v475
        %v488 = vpack.c.b16 %v478, %v477
        %v489 = vpack.c.b16 %v480, %v479
        %v490 = vpack.c.b16 %v482, %v481
        %499 = vmatpush.bf16.msra.mxu0 %v490
        %500 = vmatpush.bf16.msra.mxu0 %v489
        %501 = vmatpush.bf16.msra.mxu0 %v488
        %502 = vmatpush.bf16.msra.mxu0 %v487
        %503 = vmatpush.bf16.msra.mxu0 %v486
        %504 = vmatpush.bf16.msra.mxu0 %v485
        %505 = vmatpush.bf16.msra.mxu0 %v484
        %506 = vmatpush.bf16.msra.mxu0 %v483
        %507 = vmatmul.bf16.gmra.mxu0 %v430
        %v508 = vpop.f32.mrf.mxu0
        %v509 = vadd.f32 %v449, %v508
        %v510 = vpop.f32.mrf.mxu0
        %511 = vdwg.mxu0
        %v512 = vmax.f32 %v509, 0.0
        %v513 = vld [vmem:[#allocation3] sm:$0xff]
        %v514 = vpack.c.bf16 %v512, %v512
        %v515 = vld [vmem:[#allocation10] sm:$0xf]
        %v516 = vld [vmem:[#allocation10 + $0x4] sm:$0xf]
        %v517 = vld [vmem:[#allocation10 + $0x8] sm:$0xf]
        %v518 = vld [vmem:[#allocation10 + $0xc] sm:$0xf]
        %v519 = vld [vmem:[#allocation10 + $0x10] sm:$0xf]
        %v520 = vld [vmem:[#allocation10 + $0x14] sm:$0xf]
        %v521 = vld [vmem:[#allocation10 + $0x18] sm:$0xf]
        %v522 = vld [vmem:[#allocation10 + $0x1c] sm:$0xf]
        %v523 = vld [vmem:[#allocation10 + $0x20] sm:$0xf]
        %v524 = vld [vmem:[#allocation10 + $0x24] sm:$0xf]
        %v525 = vld [vmem:[#allocation10 + $0x28] sm:$0xf]
        %v526 = vld [vmem:[#allocation10 + $0x2c] sm:$0xf]
        %v527 = vld [vmem:[#allocation10 + $0x30] sm:$0xf]
        %v528 = vld [vmem:[#allocation10 + $0x34] sm:$0xf]
        %v529 = vld [vmem:[#allocation10 + $0x38] sm:$0xf]
        %v530 = vld [vmem:[#allocation10 + $0x3c] sm:$0xf]
        %v547 = vunpack.c.l.b16 %v515
        %v548 = vunpack.c.l.b16 %v516
        %v549 = vunpack.c.l.b16 %v517
        %v550 = vunpack.c.l.b16 %v518
        %v551 = vunpack.c.l.b16 %v519
        %v552 = vunpack.c.l.b16 %v520
        %v553 = vunpack.c.l.b16 %v521
        %v554 = vunpack.c.l.b16 %v522
        %v555 = vunpack.c.l.b16 %v523
        %v556 = vunpack.c.l.b16 %v524
        %v557 = vunpack.c.l.b16 %v525
        %v558 = vunpack.c.l.b16 %v526
        %v559 = vunpack.c.l.b16 %v527
        %v560 = vunpack.c.l.b16 %v528
        %v561 = vunpack.c.l.b16 %v529
        %v562 = vunpack.c.l.b16 %v530
        %v563 = vpack.c.b16 %v548, %v547
        %v564 = vpack.c.b16 %v550, %v549
        %v565 = vpack.c.b16 %v552, %v551
        %v566 = vpack.c.b16 %v554, %v553
        %v567 = vpack.c.b16 %v556, %v555
        %v568 = vpack.c.b16 %v558, %v557
        %v569 = vpack.c.b16 %v560, %v559
        %v570 = vpack.c.b16 %v562, %v561
        %579 = vmatpush.bf16.msra.mxu0 %v570
        %580 = vmatpush.bf16.msra.mxu0 %v569
        %581 = vmatpush.bf16.msra.mxu0 %v568
        %582 = vmatpush.bf16.msra.mxu0 %v567
        %583 = vmatpush.bf16.msra.mxu0 %v566
        %584 = vmatpush.bf16.msra.mxu0 %v565
        %585 = vmatpush.bf16.msra.mxu0 %v564
        %586 = vmatpush.bf16.msra.mxu0 %v563
        %587 = vmatmul.bf16.gmra.mxu0 %v514
        %v588 = vpop.f32.mrf.mxu0
        %v589 = vadd.f32 0.0, %v588
        %v590 = vpop.f32.mrf.mxu0
        %591 = vdwg.mxu0
        %v592 = vadd.f32 %v513, %v589
        %593 = vst [vmem:[#allocation3] sm:$0xff] %v592
        // Predicated region
        $region69: #{tpu_custom_call.1} parent=47 // pred_check
          %p594 = pneg %p386
        $region70: #{tpu_custom_call.1} parent=47 // pred_check_branch
          %596 = sbr.rel (%p594) target = $region72
        $region71: #{tpu_custom_call.1} parent=47 // pred_region
          %v597 = vld [vmem:[#allocation3] sm:$0xff]
          %v598 = vld [vmem:[%s6] sm:$0x1]
          %v600 = vperm.slane %v598, 0
          %v602 = vadd.f32 %v597, %v600
          %v603 = vld [vmem:[%s332] sm:$0xff]
          %v604 = vadd.f32 %v602, %v603
          %605 = vst [vmem:[%s381] sm:$0xff] %v604
        $region72: #{tpu_custom_call.1} parent=47 // pred_fallthru
          _
        %s606 = sand.u32 %s213, 1
        %s607 = scalar_lea.sflag [#allocation6], %s606
        %s608 = sand.u32 %s213, 1
        %s609 = smul.addr %s608, 8
        %s610 = scalar_lea.vmem [#allocation12], %s609
        // Predicated region
        $region73: #{tpu_custom_call.1} parent=47 // pred_check
          %p611 = pneg %p223
        $region74: #{tpu_custom_call.1} parent=47 // pred_check_branch
          %613 = sbr.rel (%p611) target = $region76
        $region75: #{tpu_custom_call.1} parent=47 // pred_region
          %615 = vsyncadd %s607, 0
          %s616 = smul.addr %s30, 8
          %s617 = scalar_lea.hbm %s7, %s616
          %s619 = sshll.u32 %s610, 4
          %s620 = int_to_ptr.vmem [resolvable:$true] %s619
          %s621 = sshll.u32 %s617, 4
          %s622 = int_to_ptr.hbm [resolvable:$true] %s621
          %624 = dma.vmem_to_hbm [thread:$0]  %s620, 128, %s622, %s607
        $region76: #{tpu_custom_call.1} parent=47 // pred_fallthru
          _
      $region48: #{tpu_custom_call.1} parent=5 // pred_fallthru
        _
      %p625 = scmp.le.s32.totalorder 2, %s21
      // Predicated region
      $region77: #{tpu_custom_call.1} parent=5 // pred_check
        %p626 = pneg %p625
      $region78: #{tpu_custom_call.1} parent=5 // pred_check_branch
        %628 = sbr.rel (%p626) target = $region80
      $region79: #{tpu_custom_call.1} parent=5 // pred_region
        %s629 = ssub.s32 %s21, 2
        // Predicated region
        $region81: #{tpu_custom_call.1} parent=79 // pred_check
          %p630 = pneg %p229
        $region82: #{tpu_custom_call.1} parent=79 // pred_check_branch
          %632 = sbr.rel (%p630) target = $region84
        $region83: #{tpu_custom_call.1} parent=79 // pred_region
          %s633 = sand.u32 %s214, 1
          %s634 = scalar_lea.sflag [#allocation6], %s633
          %s635 = sand.u32 %s214, 1
          %s636 = smul.addr %s635, 8
          %s637 = scalar_lea.vmem [#allocation12], %s636
          %639 = dma.done %s634, 128
        $region84: #{tpu_custom_call.1} parent=79 // pred_fallthru
          _
      $region80: #{tpu_custom_call.1} parent=5 // pred_fallthru
        _
    $region6: #{tpu_custom_call.1} parent=1 // loop_footer
      %s25 = sadd.s32 1, %s21
    $region7: #{tpu_custom_call.1} parent=1 // loop_footer_branch
      %20 = sbr.rel target = $region3
    $region8: #{tpu_custom_call.1} parent=1 // loop_exit
      _
    %640 = vsyncpa [#allocation5], 1
    %s641 = scalar_lea.sflag [#allocation5], 1
    %642 = vsyncpa %s641, 1
    %643 = vsyncpa [#allocation8], 1
    %644 = vsyncpa [#allocation11], 1
    %645 = vsyncpa [#allocation6], 1
    %s646 = scalar_lea.sflag [#allocation6], 1
    %647 = vsyncpa %s646, 1

</llo_original>
